<compile_context>
chip_gen: v6e
topology: v6e:2x2x1
jax: 0.10.0
libtpu: 0.0.40
codegen_flags: <defaults>
</compile_context>

<pallas_src>
import functools
import math

import jax
import jax.numpy as jnp
from jax import lax
from jax.experimental import pallas as pl
from jax.experimental.pallas import tpu as pltpu

D_MODEL = 512
_SCALE = 1.0 / math.sqrt(float(D_MODEL))


def _fused_attn_kernel(x_ref, w_qkv_ref, o_ref, *, compute_dtype):
    """Small-S path: a (Bb, S, D) block of batches per grid step."""
    Bb, S, D = x_ref.shape
    x2 = x_ref[...].reshape(Bb * S, D).astype(compute_dtype)
    # One MXU pass with M = Bb*S rows and N = 3*D (scale folded into Q cols).
    qkv = jnp.dot(x2, w_qkv_ref[...], preferred_element_type=jnp.float32)
    q = qkv[:, :D].reshape(Bb, S, D).astype(compute_dtype)
    k = qkv[:, D:2 * D].reshape(Bb, S, D).astype(compute_dtype)
    v = qkv[:, 2 * D:].reshape(Bb, S, D).astype(compute_dtype)

    # q @ k^T without materializing k.T (contract D of both operands).
    s = jnp.einsum("bqd,bkd->bqk", q, k, preferred_element_type=jnp.float32)
    s = s - jnp.max(s, axis=-1, keepdims=True)
    p = jnp.exp(s)

    # Normalize AFTER the PV matmul: exact 1/rowsum on (Bb,S,1) + broadcast mul.
    acc = jnp.einsum("bqk,bkd->bqd", p.astype(compute_dtype), v,
                     preferred_element_type=jnp.float32)
    inv = 1.0 / jnp.sum(p, axis=-1, keepdims=True)
    # Dropout on the attention matrix is identity in eval mode.
    # TODO(synk): training-mode dropout (pltpu.prng_seed + stateful_bernoulli).
    o_ref[...] = (acc * inv).astype(o_ref.dtype)


def _qtiled_attn_kernel(x_ref, wq_ref, wkv_ref, o_ref, k_scr, v_scr, *,
                        compute_dtype, q_tile):
    """Query-tiled path: grid = (B, S // q_tile). K/V computed once per batch."""
    i = pl.program_id(1)

    @pl.when(i == 0)
    def _():
        # Fused K/V projection for the whole batch row; kept in VMEM scratch
        # and reused by every query tile of this batch.
        kv = jnp.dot(x_ref[...].astype(compute_dtype), wkv_ref[...],
                     preferred_element_type=jnp.float32)            # (S, 2D)
        k_scr[...] = kv[:, :D_MODEL].astype(k_scr.dtype)
        v_scr[...] = kv[:, D_MODEL:].astype(v_scr.dtype)

    # Query rows sliced from the already-resident full row (no 2nd HBM stream).
    row = pl.multiple_of(i * q_tile, q_tile)
    xq = x_ref[pl.ds(row, q_tile), :].astype(compute_dtype)         # (tq, D)
    q = jnp.dot(xq, wq_ref[...],
                preferred_element_type=jnp.float32).astype(compute_dtype)

    # Contract D of q and K directly (MXU transposed-RHS feed; no K^T copy).
    s = lax.dot_general(q, k_scr[...], (((1,), (1,)), ((), ())),
                        preferred_element_type=jnp.float32)         # (tq, S)
    s = s - jnp.max(s, axis=-1, keepdims=True)
    p = jnp.exp(s)

    acc = jnp.dot(p.astype(compute_dtype), v_scr[...],
                  preferred_element_type=jnp.float32)               # (tq, D)
    inv = 1.0 / jnp.sum(p, axis=-1, keepdims=True)                  # exact
    # Dropout on p is identity in eval mode.
    o_ref[...] = (acc * inv).astype(o_ref.dtype)


def _pick_batch_block(batch, seq, max_rows=512):
    """Largest divisor Bb of `batch` with Bb*seq <= max_rows (at least 1)."""
    bb = 1
    for cand in range(1, batch + 1):
        if batch % cand == 0 and cand * seq <= max_rows:
            bb = cand
    return bb


@functools.partial(jax.jit, static_argnames=("compute_dtype", "q_tile"))
def attention_model(x, wq, wk, wv, *, compute_dtype=jnp.float32, q_tile=256):
    """x: (B, S, 512) f32; wq/wk/wv: (512, 512) in PyTorch (out, in) layout."""
    B, S, D = x.shape
    assert D == D_MODEL
    out_shape = jax.ShapeDtypeStruct((B, S, D), jnp.float32)

    if S <= q_tile:
        # Small/overhead-bound regime: fuse QKV and process Bb batches at once
        # so the projection matmul sees M = Bb*S rows (better MXU occupancy).
        Bb = _pick_batch_block(B, S)
        w_qkv = jnp.concatenate([wq.T * _SCALE, wk.T, wv.T],
                                axis=1).astype(compute_dtype)       # (D, 3D)
        kernel = functools.partial(_fused_attn_kernel, compute_dtype=compute_dtype)
        grid_spec = pltpu.PrefetchScalarGridSpec(
            num_scalar_prefetch=0,
            grid=(B // Bb,),
            in_specs=[
                pl.BlockSpec((Bb, S, D), lambda b: (b, 0, 0)),
                # Constant block across the grid: single-buffer it.
                pl.BlockSpec((D, 3 * D), lambda b: (0, 0),
                             pipeline_mode=pl.Buffered(1)),
            ],
            out_specs=pl.BlockSpec((Bb, S, D), lambda b: (b, 0, 0)),
        )
        dims = ("parallel",)
        args = (x, w_qkv)
    else:
        if S % q_tile != 0:
            raise ValueError(f"S={S} must be a multiple of q_tile={q_tile}")
        nq = S // q_tile
        wq_t = (wq.T * _SCALE).astype(compute_dtype)                # (D, D)
        w_kv = jnp.concatenate([wk.T, wv.T], axis=1).astype(compute_dtype)
        kernel = functools.partial(_qtiled_attn_kernel,
                                   compute_dtype=compute_dtype, q_tile=q_tile)
        grid_spec = pltpu.PrefetchScalarGridSpec(
            num_scalar_prefetch=0,
            grid=(B, nq),
            in_specs=[
                # Full batch row of x (resident across the q-tile axis).
                pl.BlockSpec((pl.Squeezed(), S, D), lambda b, i: (b, 0, 0)),
                # Weights: constant blocks -> single-buffered.
                pl.BlockSpec((D, D), lambda b, i: (0, 0),
                             pipeline_mode=pl.Buffered(1)),
                pl.BlockSpec((D, 2 * D), lambda b, i: (0, 0),
                             pipeline_mode=pl.Buffered(1)),
            ],
            out_specs=pl.BlockSpec((pl.Squeezed(), q_tile, D),
                                   lambda b, i: (b, i, 0)),
            scratch_shapes=[
                pltpu.VMEM((S, D), compute_dtype),   # K for the current batch
                pltpu.VMEM((S, D), compute_dtype),   # V for the current batch
            ],
        )
        # K/V scratch is carried across the q-tile axis -> keep it sequential
        # ("arbitrary"); the batch axis stays "parallel" (megacore).
        dims = ("parallel", "arbitrary")
        args = (x, wq_t, w_kv)

    return pl.pallas_call(
        kernel,
        out_shape=out_shape,
        grid_spec=grid_spec,
        compiler_params=pltpu.CompilerParams(
            dimension_semantics=dims,
            # Headroom that still fits v7x's 64 MiB physical VMEM.
            vmem_limit_bytes=48 * 1024 * 1024,
        ),
    )(*args)


def _reference(x, wq, wk, wv):
    hi = jax.lax.Precision.HIGHEST
    q = jnp.einsum("bsd,od->bso", x, wq, precision=hi)
    k = jnp.einsum("bsd,od->bso", x, wk, precision=hi)
    v = jnp.einsum("bsd,od->bso", x, wv, precision=hi)
    s = jnp.einsum("bqd,bkd->bqk", q, k, precision=hi) * _SCALE
    p = jax.nn.softmax(s, axis=-1)
    return jnp.einsum("bqk,bkd->bqd", p, v, precision=hi)


if __name__ == "__main__":
    key = jax.random.PRNGKey(0)
    kx, kq, kk, kv, kx2 = jax.random.split(key, 5)

    # Deterministic "Linear(512, 512, bias=False)" weights, PyTorch (out, in).
    bound = 1.0 / math.sqrt(D_MODEL)
    wq = jax.random.uniform(kq, (D_MODEL, D_MODEL), jnp.float32, -bound, bound)
    wk = jax.random.uniform(kk, (D_MODEL, D_MODEL), jnp.float32, -bound, bound)
    wv = jax.random.uniform(kv, (D_MODEL, D_MODEL), jnp.float32, -bound, bound)

    # Small regime (B=2, S=8): fused multi-batch single-tile path, f32.
    x_small = jax.random.normal(kx, (2, 8, D_MODEL), dtype=jnp.float32)
    out = jax.block_until_ready(attention_model(x_small, wq, wk, wv))
    ref = _reference(x_small, wq, wk, wv)
    assert out.shape == x_small.shape
    assert jnp.allclose(out, ref, atol=2e-2, rtol=2e-2), \
        float(jnp.max(jnp.abs(out - ref)))

    # bf16 MXU inputs with f32 accumulation (v6e/v7x throughput path).
    out_bf16 = jax.block_until_ready(
        attention_model(x_small, wq, wk, wv, compute_dtype=jnp.bfloat16))
    assert jnp.allclose(out_bf16, ref, atol=5e-2, rtol=5e-2), \
        float(jnp.max(jnp.abs(out_bf16 - ref)))

    # Larger S exercises the query-tiled path (grid = (B, S // q_tile)).
    x_big = jax.random.normal(kx2, (2, 512, D_MODEL), dtype=jnp.float32)
    out_big = jax.block_until_ready(attention_model(x_big, wq, wk, wv, q_tile=256))
    ref_big = _reference(x_big, wq, wk, wv)
    assert jnp.allclose(out_big, ref_big, atol=2e-2, rtol=2e-2), \
        float(jnp.max(jnp.abs(out_big - ref_big)))

    print("KERNEL_OK")
</pallas_src>

<mosaic_0001>
module attributes {stable_mosaic.version = 11 : i64} {
  func.func @_fused_attn_kernel(%arg0: i32, %arg1: memref<2x8x512xf32, #tpu.memory_space<vmem>>, %arg2: memref<512x1536xf32, #tpu.memory_space<vmem>>, %arg3: memref<2x8x512xf32, #tpu.memory_space<vmem>>) attributes {dimension_semantics = [#tpu.dimension_semantics<parallel>], iteration_bounds = array<i64: 1>, scalar_prefetch = 0 : i64, scratch_operands = 0 : i64, tpu.core_type = #tpu.core_type<tc>, window_params = [{transform_indices = @transform_0, window_bounds = array<i64: 2, 8, 512>}, {pipeline_mode = #tpu.pipeline_mode<synchronous>, transform_indices = @transform_1, window_bounds = array<i64: 512, 1536>}, {transform_indices = @transform_2, window_bounds = array<i64: 2, 8, 512>}]} {
    %c0 = arith.constant 0 : index
    %c0_0 = arith.constant 0 : index
    %c0_1 = arith.constant 0 : index
    %0 = vector.load %arg1[%c0, %c0_0, %c0_1] : memref<2x8x512xf32, #tpu.memory_space<vmem>>, vector<2x8x512xf32>
    %1 = vector.shape_cast %0 : vector<2x8x512xf32> to vector<16x512xf32>
    %c0_2 = arith.constant 0 : index
    %c0_3 = arith.constant 0 : index
    %2 = vector.load %arg2[%c0_2, %c0_3] : memref<512x1536xf32, #tpu.memory_space<vmem>>, vector<512x1536xf32>
    %cst = arith.constant dense<0.000000e+00> : vector<16x1536xf32>
    %3 = tpu.matmul %1, %2, %cst {dimension_numbers = #tpu.dot_dimension_numbers<[1], [0], [0], [1], [0, 0, 1, 1], [], []>} : vector<16x512xf32>, vector<512x1536xf32>, vector<16x1536xf32> -> vector<16x1536xf32>
    %4 = vector.extract_strided_slice %3 {offsets = [0, 0], sizes = [16, 512], strides = [1, 1]} : vector<16x1536xf32> to vector<16x512xf32>
    %5 = vector.shape_cast %4 : vector<16x512xf32> to vector<2x8x512xf32>
    %6 = vector.extract_strided_slice %3 {offsets = [0, 512], sizes = [16, 512], strides = [1, 1]} : vector<16x1536xf32> to vector<16x512xf32>
    %7 = vector.shape_cast %6 : vector<16x512xf32> to vector<2x8x512xf32>
    %8 = vector.extract_strided_slice %3 {offsets = [0, 1024], sizes = [16, 512], strides = [1, 1]} : vector<16x1536xf32> to vector<16x512xf32>
    %9 = vector.shape_cast %8 : vector<16x512xf32> to vector<2x8x512xf32>
    "tpu.trace_start"() <{level = 10 : i32, message = "bqd,bkd->bqk"}> : () -> ()
    %cst_4 = arith.constant dense<0.000000e+00> : vector<2x8x8xf32>
    %10 = tpu.matmul %5, %7, %cst_4 {dimension_numbers = #tpu.dot_dimension_numbers<[2], [2], [1], [1], [0, 0, 0, 1, 1, 1], [0], [0]>} : vector<2x8x512xf32>, vector<2x8x512xf32>, vector<2x8x8xf32> -> vector<2x8x8xf32>
    "tpu.trace_stop"() : () -> ()
    %cst_5 = arith.constant dense<0xFF800000> : vector<2x8xf32>
    %11 = vector.multi_reduction <maximumf>, %10, %cst_5 [2] : vector<2x8x8xf32> to vector<2x8xf32>
    %12 = vector.shape_cast %11 : vector<2x8xf32> to vector<2x8x1xf32>
    %13 = vector.broadcast %12 : vector<2x8x1xf32> to vector<2x8x8xf32>
    %14 = arith.subf %10, %13 : vector<2x8x8xf32>
    %15 = math.exp %14 : vector<2x8x8xf32>
    "tpu.trace_start"() <{level = 10 : i32, message = "bqk,bkd->bqd"}> : () -> ()
    %cst_6 = arith.constant dense<0.000000e+00> : vector<2x8x512xf32>
    %16 = tpu.matmul %15, %9, %cst_6 {dimension_numbers = #tpu.dot_dimension_numbers<[2], [1], [1], [2], [0, 0, 0, 1, 1, 2], [0], [0]>} : vector<2x8x8xf32>, vector<2x8x512xf32>, vector<2x8x512xf32> -> vector<2x8x512xf32>
    "tpu.trace_stop"() : () -> ()
    %cst_7 = arith.constant dense<0.000000e+00> : vector<2x8xf32>
    %17 = vector.multi_reduction <add>, %15, %cst_7 [2] : vector<2x8x8xf32> to vector<2x8xf32>
    %18 = vector.shape_cast %17 : vector<2x8xf32> to vector<2x8x1xf32>
    %cst_8 = arith.constant 1.000000e+00 : f32
    %19 = vector.broadcast %cst_8 : f32 to vector<2x8x1xf32>
    %20 = arith.divf %19, %18 : vector<2x8x1xf32>
    %21 = vector.broadcast %20 : vector<2x8x1xf32> to vector<2x8x512xf32>
    %22 = arith.mulf %16, %21 : vector<2x8x512xf32>
    %c0_9 = arith.constant 0 : index
    %c0_10 = arith.constant 0 : index
    %c0_11 = arith.constant 0 : index
    %23 = vector.load %arg3[%c0_9, %c0_10, %c0_11] : memref<2x8x512xf32, #tpu.memory_space<vmem>>, vector<2x8x512xf32>
    tpu.vector_store %arg3[%c0_9, %c0_10, %c0_11], %22 {strides = array<i32>} : memref<2x8x512xf32, #tpu.memory_space<vmem>>, vector<2x8x512xf32>,
    return
  }
  func.func @transform_0(%arg0: i32) -> (i32, i32, i32) {
    %c0_i32 = arith.constant 0 : i32
    %c0_i32_0 = arith.constant 0 : i32
    %c0_i32_1 = arith.constant 0 : i32
    return %arg0, %c0_i32, %c0_i32_0 : i32, i32, i32
  }
  func.func @transform_1(%arg0: i32) -> (i32, i32) {
    %c0_i32 = arith.constant 0 : i32
    %c0_i32_0 = arith.constant 0 : i32
    %c0_i32_1 = arith.constant 0 : i32
    return %c0_i32, %c0_i32_0 : i32, i32
  }
  func.func @transform_2(%arg0: i32) -> (i32, i32, i32) {
    %c0_i32 = arith.constant 0 : i32
    %c0_i32_0 = arith.constant 0 : i32
    %c0_i32_1 = arith.constant 0 : i32
    return %arg0, %c0_i32, %c0_i32_0 : i32, i32, i32
  }
}

</mosaic_0001>

<llo_original>
// kernel: attention_model.1
$region0: #{attention_model.1}
  #allocation0 [shape = 'u32[]', space=smem, size = 0x4, offset = 0x4, fixed_abs, tag = 'smem constant byte address 0x4 - core index']
  #allocation1 [shape = 'u32[144,128]{1,0:T(1,128)}', space=vmem, size = 0x12000, scoped, tag = 'internal scratch']
  %s0 = inlined_call_operand.vmem [shape: f32[2,8,512], index: 0, kind: input, shape index: {}]
  %s1 = inlined_call_operand.vmem [shape: f32[512,1536], index: 1, kind: input, shape index: {}]
  %s2 = inlined_call_operand.hbm [shape: f32[2,8,512], index: 2, kind: output, shape index: {}]
  %s3 = sld [smem:[#allocation0]]
  $region18: #{attention_model.1} parent=0
    _
  %s5 = ssub.s32 1, %s3
  %s6 = scalar_select 0, %s5, %s3
  $region1: #{attention_model.1} parent=0
    #allocation2 [shape = 'u8[32768]{0}', space=vmem, size = 0x8000, scoped, tag = 'output window, operand 0, single buffered']
    #allocation3 [shape = 's32[1]{0}', space=sflag, size = 0x4, scoped, tag = 'scoped memory for attention_model.1']
    %7 = vsyncpa [#allocation3], 0
    // Predicated region
    $region2: #{attention_model.1} parent=1 // pred_check
      _
    $region3: #{attention_model.1} parent=1 // pred_check_branch
      %9 = sbr.rel (0) target = $region5
    $region4: #{attention_model.1} parent=1 // pred_region
      _
    $region5: #{attention_model.1} parent=1 // pred_fallthru
      _
    // Predicated region
    $region6: #{attention_model.1} parent=1 // pred_check
      _
    $region7: #{attention_model.1} parent=1 // pred_check_branch
      %11 = sbr.rel (0) target = $region9
    $region8: #{attention_model.1} parent=1 // pred_region
      _
    $region9: #{attention_model.1} parent=1 // pred_fallthru
      _
    %v12 = vld [vmem:[%s0] sm:$0xff]
    %v13 = vld [vmem:[%s0 + $0x8] sm:$0xff]
    %v14 = vld [vmem:[%s0 + $0x10] sm:$0xff]
    %v15 = vld [vmem:[%s0 + $0x18] sm:$0xff]
    %v16 = vld [vmem:[%s0 + $0x20] sm:$0xff]
    %v17 = vld [vmem:[%s0 + $0x28] sm:$0xff]
    %v18 = vld [vmem:[%s0 + $0x30] sm:$0xff]
    %v19 = vld [vmem:[%s0 + $0x38] sm:$0xff]
    %v20 = vld [vmem:[%s1] sm:$0xff]
    %v21 = vld [vmem:[%s1 + $0x8] sm:$0xff]
    %v22 = vld [vmem:[%s1 + $0x10] sm:$0xff]
    %v23 = vld [vmem:[%s1 + $0x18] sm:$0xff]
    %v24 = vld [vmem:[%s1 + $0x20] sm:$0xff]
    %v25 = vld [vmem:[%s1 + $0x28] sm:$0xff]
    %v26 = vld [vmem:[%s1 + $0x30] sm:$0xff]
    %v27 = vld [vmem:[%s1 + $0x38] sm:$0xff]
    %v28 = vld [vmem:[%s1 + $0x40] sm:$0xff]
    %v29 = vld [vmem:[%s1 + $0x48] sm:$0xff]
    %v30 = vld [vmem:[%s1 + $0x50] sm:$0xff]
    %v31 = vld [vmem:[%s1 + $0x58] sm:$0xff]
    %v32 = vld [vmem:[%s1 + $0x60] sm:$0xff]
    %v33 = vld [vmem:[%s1 + $0x68] sm:$0xff]
    %v34 = vld [vmem:[%s1 + $0x70] sm:$0xff]
    %v35 = vld [vmem:[%s1 + $0x78] sm:$0xff]
    %v36 = vld [vmem:[%s1 + $0x80] sm:$0xff]
    %v37 = vld [vmem:[%s1 + $0x88] sm:$0xff]
    %v38 = vld [vmem:[%s1 + $0x90] sm:$0xff]
    %v39 = vld [vmem:[%s1 + $0x98] sm:$0xff]
    %v40 = vld [vmem:[%s1 + $0xa0] sm:$0xff]
    %v41 = vld [vmem:[%s1 + $0xa8] sm:$0xff]
    %v42 = vld [vmem:[%s1 + $0xb0] sm:$0xff]
    %v43 = vld [vmem:[%s1 + $0xb8] sm:$0xff]
    %v44 = vld [vmem:[%s1 + $0xc0] sm:$0xff]
    %v45 = vld [vmem:[%s1 + $0xc8] sm:$0xff]
    %v46 = vld [vmem:[%s1 + $0xd0] sm:$0xff]
    %v47 = vld [vmem:[%s1 + $0xd8] sm:$0xff]
    %v48 = vld [vmem:[%s1 + $0xe0] sm:$0xff]
    %v49 = vld [vmem:[%s1 + $0xe8] sm:$0xff]
    %v50 = vld [vmem:[%s1 + $0xf0] sm:$0xff]
    %v51 = vld [vmem:[%s1 + $0xf8] sm:$0xff]
    %v52 = vld [vmem:[%s1 + $0x100] sm:$0xff]
    %v53 = vld [vmem:[%s1 + $0x108] sm:$0xff]
    %v54 = vld [vmem:[%s1 + $0x110] sm:$0xff]
    %v55 = vld [vmem:[%s1 + $0x118] sm:$0xff]
    %v56 = vld [vmem:[%s1 + $0x120] sm:$0xff]
    %v57 = vld [vmem:[%s1 + $0x128] sm:$0xff]
    %v58 = vld [vmem:[%s1 + $0x130] sm:$0xff]
    %v59 = vld [vmem:[%s1 + $0x138] sm:$0xff]
    %v60 = vld [vmem:[%s1 + $0x140] sm:$0xff]
    %v61 = vld [vmem:[%s1 + $0x148] sm:$0xff]
    %v62 = vld [vmem:[%s1 + $0x150] sm:$0xff]
    %v63 = vld [vmem:[%s1 + $0x158] sm:$0xff]
    %v64 = vld [vmem:[%s1 + $0x160] sm:$0xff]
    %v65 = vld [vmem:[%s1 + $0x168] sm:$0xff]
    %v66 = vld [vmem:[%s1 + $0x170] sm:$0xff]
    %v67 = vld [vmem:[%s1 + $0x178] sm:$0xff]
    %v68 = vld [vmem:[%s1 + $0x180] sm:$0xff]
    %v69 = vld [vmem:[%s1 + $0x188] sm:$0xff]
    %v70 = vld [vmem:[%s1 + $0x190] sm:$0xff]
    %v71 = vld [vmem:[%s1 + $0x198] sm:$0xff]
    %v72 = vld [vmem:[%s1 + $0x1a0] sm:$0xff]
    %v73 = vld [vmem:[%s1 + $0x1a8] sm:$0xff]
    %v74 = vld [vmem:[%s1 + $0x1b0] sm:$0xff]
    %v75 = vld [vmem:[%s1 + $0x1b8] sm:$0xff]
    %v76 = vld [vmem:[%s1 + $0x1c0] sm:$0xff]
    %v77 = vld [vmem:[%s1 + $0x1c8] sm:$0xff]
    %v78 = vld [vmem:[%s1 + $0x1d0] sm:$0xff]
    %v79 = vld [vmem:[%s1 + $0x1d8] sm:$0xff]
    %v80 = vld [vmem:[%s1 + $0x1e0] sm:$0xff]
    %v81 = vld [vmem:[%s1 + $0x1e8] sm:$0xff]
    %v82 = vld [vmem:[%s1 + $0x1f0] sm:$0xff]
    %v83 = vld [vmem:[%s1 + $0x1f8] sm:$0xff]
    %v84 = vld [vmem:[%s1 + $0x200] sm:$0xff]
    %v85 = vld [vmem:[%s1 + $0x208] sm:$0xff]
    %v86 = vld [vmem:[%s1 + $0x210] sm:$0xff]
    %v87 = vld [vmem:[%s1 + $0x218] sm:$0xff]
    %v88 = vld [vmem:[%s1 + $0x220] sm:$0xff]
    %v89 = vld [vmem:[%s1 + $0x228] sm:$0xff]
    %v90 = vld [vmem:[%s1 + $0x230] sm:$0xff]
    %v91 = vld [vmem:[%s1 + $0x238] sm:$0xff]
    %v92 = vld [vmem:[%s1 + $0x240] sm:$0xff]
    %v93 = vld [vmem:[%s1 + $0x248] sm:$0xff]
    %v94 = vld [vmem:[%s1 + $0x250] sm:$0xff]
    %v95 = vld [vmem:[%s1 + $0x258] sm:$0xff]
    %v96 = vld [vmem:[%s1 + $0x260] sm:$0xff]
    %v97 = vld [vmem:[%s1 + $0x268] sm:$0xff]
    %v98 = vld [vmem:[%s1 + $0x270] sm:$0xff]
    %v99 = vld [vmem:[%s1 + $0x278] sm:$0xff]
    %v100 = vld [vmem:[%s1 + $0x280] sm:$0xff]
    %v101 = vld [vmem:[%s1 + $0x288] sm:$0xff]
    %v102 = vld [vmem:[%s1 + $0x290] sm:$0xff]
    %v103 = vld [vmem:[%s1 + $0x298] sm:$0xff]
    %v104 = vld [vmem:[%s1 + $0x2a0] sm:$0xff]
    %v105 = vld [vmem:[%s1 + $0x2a8] sm:$0xff]
    %v106 = vld [vmem:[%s1 + $0x2b0] sm:$0xff]
    %v107 = vld [vmem:[%s1 + $0x2b8] sm:$0xff]
    %v108 = vld [vmem:[%s1 + $0x2c0] sm:$0xff]
    %v109 = vld [vmem:[%s1 + $0x2c8] sm:$0xff]
    %v110 = vld [vmem:[%s1 + $0x2d0] sm:$0xff]
    %v111 = vld [vmem:[%s1 + $0x2d8] sm:$0xff]
    %v112 = vld [vmem:[%s1 + $0x2e0] sm:$0xff]
    %v113 = vld [vmem:[%s1 + $0x2e8] sm:$0xff]
    %v114 = vld [vmem:[%s1 + $0x2f0] sm:$0xff]
    %v115 = vld [vmem:[%s1 + $0x2f8] sm:$0xff]
    %v116 = vld [vmem:[%s1 + $0x300] sm:$0xff]
    %v117 = vld [vmem:[%s1 + $0x308] sm:$0xff]
    %v118 = vld [vmem:[%s1 + $0x310] sm:$0xff]
    %v119 = vld [vmem:[%s1 + $0x318] sm:$0xff]
    %v120 = vld [vmem:[%s1 + $0x320] sm:$0xff]
    %v121 = vld [vmem:[%s1 + $0x328] sm:$0xff]
    %v122 = vld [vmem:[%s1 + $0x330] sm:$0xff]
    %v123 = vld [vmem:[%s1 + $0x338] sm:$0xff]
    %v124 = vld [vmem:[%s1 + $0x340] sm:$0xff]
    %v125 = vld [vmem:[%s1 + $0x348] sm:$0xff]
    %v126 = vld [vmem:[%s1 + $0x350] sm:$0xff]
    %v127 = vld [vmem:[%s1 + $0x358] sm:$0xff]
    %v128 = vld [vmem:[%s1 + $0x360] sm:$0xff]
    %v129 = vld [vmem:[%s1 + $0x368] sm:$0xff]
    %v130 = vld [vmem:[%s1 + $0x370] sm:$0xff]
    %v131 = vld [vmem:[%s1 + $0x378] sm:$0xff]
    %v132 = vld [vmem:[%s1 + $0x380] sm:$0xff]
    %v133 = vld [vmem:[%s1 + $0x388] sm:$0xff]
    %v134 = vld [vmem:[%s1 + $0x390] sm:$0xff]
    %v135 = vld [vmem:[%s1 + $0x398] sm:$0xff]
    %v136 = vld [vmem:[%s1 + $0x3a0] sm:$0xff]
    %v137 = vld [vmem:[%s1 + $0x3a8] sm:$0xff]
    %v138 = vld [vmem:[%s1 + $0x3b0] sm:$0xff]
    %v139 = vld [vmem:[%s1 + $0x3b8] sm:$0xff]
    %v140 = vld [vmem:[%s1 + $0x3c0] sm:$0xff]
    %v141 = vld [vmem:[%s1 + $0x3c8] sm:$0xff]
    %v142 = vld [vmem:[%s1 + $0x3d0] sm:$0xff]
    %v143 = vld [vmem:[%s1 + $0x3d8] sm:$0xff]
    %v144 = vld [vmem:[%s1 + $0x3e0] sm:$0xff]
    %v145 = vld [vmem:[%s1 + $0x3e8] sm:$0xff]
    %v146 = vld [vmem:[%s1 + $0x3f0] sm:$0xff]
    %v147 = vld [vmem:[%s1 + $0x3f8] sm:$0xff]
    %v148 = vld [vmem:[%s1 + $0x400] sm:$0xff]
    %v149 = vld [vmem:[%s1 + $0x408] sm:$0xff]
    %v150 = vld [vmem:[%s1 + $0x410] sm:$0xff]
    %v151 = vld [vmem:[%s1 + $0x418] sm:$0xff]
    %v152 = vld [vmem:[%s1 + $0x420] sm:$0xff]
    %v153 = vld [vmem:[%s1 + $0x428] sm:$0xff]
    %v154 = vld [vmem:[%s1 + $0x430] sm:$0xff]
    %v155 = vld [vmem:[%s1 + $0x438] sm:$0xff]
    %v156 = vld [vmem:[%s1 + $0x440] sm:$0xff]
    %v157 = vld [vmem:[%s1 + $0x448] sm:$0xff]
    %v158 = vld [vmem:[%s1 + $0x450] sm:$0xff]
    %v159 = vld [vmem:[%s1 + $0x458] sm:$0xff]
    %v160 = vld [vmem:[%s1 + $0x460] sm:$0xff]
    %v161 = vld [vmem:[%s1 + $0x468] sm:$0xff]
    %v162 = vld [vmem:[%s1 + $0x470] sm:$0xff]
    %v163 = vld [vmem:[%s1 + $0x478] sm:$0xff]
    %v164 = vld [vmem:[%s1 + $0x480] sm:$0xff]
    %v165 = vld [vmem:[%s1 + $0x488] sm:$0xff]
    %v166 = vld [vmem:[%s1 + $0x490] sm:$0xff]
    %v167 = vld [vmem:[%s1 + $0x498] sm:$0xff]
    %v168 = vld [vmem:[%s1 + $0x4a0] sm:$0xff]
    %v169 = vld [vmem:[%s1 + $0x4a8] sm:$0xff]
    %v170 = vld [vmem:[%s1 + $0x4b0] sm:$0xff]
    %v171 = vld [vmem:[%s1 + $0x4b8] sm:$0xff]
    %v172 = vld [vmem:[%s1 + $0x4c0] sm:$0xff]
    %v173 = vld [vmem:[%s1 + $0x4c8] sm:$0xff]
    %v174 = vld [vmem:[%s1 + $0x4d0] sm:$0xff]
    %v175 = vld [vmem:[%s1 + $0x4d8] sm:$0xff]
    %v176 = vld [vmem:[%s1 + $0x4e0] sm:$0xff]
    %v177 = vld [vmem:[%s1 + $0x4e8] sm:$0xff]
    %v178 = vld [vmem:[%s1 + $0x4f0] sm:$0xff]
    %v179 = vld [vmem:[%s1 + $0x4f8] sm:$0xff]
    %v180 = vld [vmem:[%s1 + $0x500] sm:$0xff]
    %v181 = vld [vmem:[%s1 + $0x508] sm:$0xff]
    %v182 = vld [vmem:[%s1 + $0x510] sm:$0xff]
    %v183 = vld [vmem:[%s1 + $0x518] sm:$0xff]
    %v184 = vld [vmem:[%s1 + $0x520] sm:$0xff]
    %v185 = vld [vmem:[%s1 + $0x528] sm:$0xff]
    %v186 = vld [vmem:[%s1 + $0x530] sm:$0xff]
    %v187 = vld [vmem:[%s1 + $0x538] sm:$0xff]
    %v188 = vld [vmem:[%s1 + $0x540] sm:$0xff]
    %v189 = vld [vmem:[%s1 + $0x548] sm:$0xff]
    %v190 = vld [vmem:[%s1 + $0x550] sm:$0xff]
    %v191 = vld [vmem:[%s1 + $0x558] sm:$0xff]
    %v192 = vld [vmem:[%s1 + $0x560] sm:$0xff]
    %v193 = vld [vmem:[%s1 + $0x568] sm:$0xff]
    %v194 = vld [vmem:[%s1 + $0x570] sm:$0xff]
    %v195 = vld [vmem:[%s1 + $0x578] sm:$0xff]
    %v196 = vld [vmem:[%s1 + $0x580] sm:$0xff]
    %v197 = vld [vmem:[%s1 + $0x588] sm:$0xff]
    %v198 = vld [vmem:[%s1 + $0x590] sm:$0xff]
    %v199 = vld [vmem:[%s1 + $0x598] sm:$0xff]
    %v200 = vld [vmem:[%s1 + $0x5a0] sm:$0xff]
    %v201 = vld [vmem:[%s1 + $0x5a8] sm:$0xff]
    %v202 = vld [vmem:[%s1 + $0x5b0] sm:$0xff]
    %v203 = vld [vmem:[%s1 + $0x5b8] sm:$0xff]
    %v204 = vld [vmem:[%s1 + $0x5c0] sm:$0xff]
    %v205 = vld [vmem:[%s1 + $0x5c8] sm:$0xff]
    %v206 = vld [vmem:[%s1 + $0x5d0] sm:$0xff]
    %v207 = vld [vmem:[%s1 + $0x5d8] sm:$0xff]
    %v208 = vld [vmem:[%s1 + $0x5e0] sm:$0xff]
    %v209 = vld [vmem:[%s1 + $0x5e8] sm:$0xff]
    %v210 = vld [vmem:[%s1 + $0x5f0] sm:$0xff]
    %v211 = vld [vmem:[%s1 + $0x5f8] sm:$0xff]
    %v212 = vld [vmem:[%s1 + $0x600] sm:$0xff]
    %v213 = vld [vmem:[%s1 + $0x608] sm:$0xff]
    %v214 = vld [vmem:[%s1 + $0x610] sm:$0xff]
    %v215 = vld [vmem:[%s1 + $0x618] sm:$0xff]
    %v216 = vld [vmem:[%s1 + $0x620] sm:$0xff]
    %v217 = vld [vmem:[%s1 + $0x628] sm:$0xff]
    %v218 = vld [vmem:[%s1 + $0x630] sm:$0xff]
    %v219 = vld [vmem:[%s1 + $0x638] sm:$0xff]
    %v220 = vld [vmem:[%s1 + $0x640] sm:$0xff]
    %v221 = vld [vmem:[%s1 + $0x648] sm:$0xff]
    %v222 = vld [vmem:[%s1 + $0x650] sm:$0xff]
    %v223 = vld [vmem:[%s1 + $0x658] sm:$0xff]
    %v224 = vld [vmem:[%s1 + $0x660] sm:$0xff]
    %v225 = vld [vmem:[%s1 + $0x668] sm:$0xff]
    %v226 = vld [vmem:[%s1 + $0x670] sm:$0xff]
    %v227 = vld [vmem:[%s1 + $0x678] sm:$0xff]
    %v228 = vld [vmem:[%s1 + $0x680] sm:$0xff]
    %v229 = vld [vmem:[%s1 + $0x688] sm:$0xff]
    %v230 = vld [vmem:[%s1 + $0x690] sm:$0xff]
    %v231 = vld [vmem:[%s1 + $0x698] sm:$0xff]
    %v232 = vld [vmem:[%s1 + $0x6a0] sm:$0xff]
    %v233 = vld [vmem:[%s1 + $0x6a8] sm:$0xff]
    %v234 = vld [vmem:[%s1 + $0x6b0] sm:$0xff]
    %v235 = vld [vmem:[%s1 + $0x6b8] sm:$0xff]
    %v236 = vld [vmem:[%s1 + $0x6c0] sm:$0xff]
    %v237 = vld [vmem:[%s1 + $0x6c8] sm:$0xff]
    %v238 = vld [vmem:[%s1 + $0x6d0] sm:$0xff]
    %v239 = vld [vmem:[%s1 + $0x6d8] sm:$0xff]
    %v240 = vld [vmem:[%s1 + $0x6e0] sm:$0xff]
    %v241 = vld [vmem:[%s1 + $0x6e8] sm:$0xff]
    %v242 = vld [vmem:[%s1 + $0x6f0] sm:$0xff]
    %v243 = vld [vmem:[%s1 + $0x6f8] sm:$0xff]
    %v244 = vld [vmem:[%s1 + $0x700] sm:$0xff]
    %v245 = vld [vmem:[%s1 + $0x708] sm:$0xff]
    %v246 = vld [vmem:[%s1 + $0x710] sm:$0xff]
    %v247 = vld [vmem:[%s1 + $0x718] sm:$0xff]
    %v248 = vld [vmem:[%s1 + $0x720] sm:$0xff]
    %v249 = vld [vmem:[%s1 + $0x728] sm:$0xff]
    %v250 = vld [vmem:[%s1 + $0x730] sm:$0xff]
    %v251 = vld [vmem:[%s1 + $0x738] sm:$0xff]
    %v252 = vld [vmem:[%s1 + $0x740] sm:$0xff]
    %v253 = vld [vmem:[%s1 + $0x748] sm:$0xff]
    %v254 = vld [vmem:[%s1 + $0x750] sm:$0xff]
    %v255 = vld [vmem:[%s1 + $0x758] sm:$0xff]
    %v256 = vld [vmem:[%s1 + $0x760] sm:$0xff]
    %v257 = vld [vmem:[%s1 + $0x768] sm:$0xff]
    %v258 = vld [vmem:[%s1 + $0x770] sm:$0xff]
    %v259 = vld [vmem:[%s1 + $0x778] sm:$0xff]
    %v260 = vld [vmem:[%s1 + $0x780] sm:$0xff]
    %v261 = vld [vmem:[%s1 + $0x788] sm:$0xff]
    %v262 = vld [vmem:[%s1 + $0x790] sm:$0xff]
    %v263 = vld [vmem:[%s1 + $0x798] sm:$0xff]
    %v264 = vld [vmem:[%s1 + $0x7a0] sm:$0xff]
    %v265 = vld [vmem:[%s1 + $0x7a8] sm:$0xff]
    %v266 = vld [vmem:[%s1 + $0x7b0] sm:$0xff]
    %v267 = vld [vmem:[%s1 + $0x7b8] sm:$0xff]
    %v268 = vld [vmem:[%s1 + $0x7c0] sm:$0xff]
    %v269 = vld [vmem:[%s1 + $0x7c8] sm:$0xff]
    %v270 = vld [vmem:[%s1 + $0x7d0] sm:$0xff]
    %v271 = vld [vmem:[%s1 + $0x7d8] sm:$0xff]
    %v272 = vld [vmem:[%s1 + $0x7e0] sm:$0xff]
    %v273 = vld [vmem:[%s1 + $0x7e8] sm:$0xff]
    %v274 = vld [vmem:[%s1 + $0x7f0] sm:$0xff]
    %v275 = vld [vmem:[%s1 + $0x7f8] sm:$0xff]
    %v276 = vld [vmem:[%s1 + $0x800] sm:$0xff]
    %v277 = vld [vmem:[%s1 + $0x808] sm:$0xff]
    %v278 = vld [vmem:[%s1 + $0x810] sm:$0xff]
    %v279 = vld [vmem:[%s1 + $0x818] sm:$0xff]
    %v280 = vld [vmem:[%s1 + $0x820] sm:$0xff]
    %v281 = vld [vmem:[%s1 + $0x828] sm:$0xff]
    %v282 = vld [vmem:[%s1 + $0x830] sm:$0xff]
    %v283 = vld [vmem:[%s1 + $0x838] sm:$0xff]
    %v284 = vld [vmem:[%s1 + $0x840] sm:$0xff]
    %v285 = vld [vmem:[%s1 + $0x848] sm:$0xff]
    %v286 = vld [vmem:[%s1 + $0x850] sm:$0xff]
    %v287 = vld [vmem:[%s1 + $0x858] sm:$0xff]
    %v288 = vld [vmem:[%s1 + $0x860] sm:$0xff]
    %v289 = vld [vmem:[%s1 + $0x868] sm:$0xff]
    %v290 = vld [vmem:[%s1 + $0x870] sm:$0xff]
    %v291 = vld [vmem:[%s1 + $0x878] sm:$0xff]
    %v292 = vld [vmem:[%s1 + $0x880] sm:$0xff]
    %v293 = vld [vmem:[%s1 + $0x888] sm:$0xff]
    %v294 = vld [vmem:[%s1 + $0x890] sm:$0xff]
    %v295 = vld [vmem:[%s1 + $0x898] sm:$0xff]
    %v296 = vld [vmem:[%s1 + $0x8a0] sm:$0xff]
    %v297 = vld [vmem:[%s1 + $0x8a8] sm:$0xff]
    %v298 = vld [vmem:[%s1 + $0x8b0] sm:$0xff]
    %v299 = vld [vmem:[%s1 + $0x8b8] sm:$0xff]
    %v300 = vld [vmem:[%s1 + $0x8c0] sm:$0xff]
    %v301 = vld [vmem:[%s1 + $0x8c8] sm:$0xff]
    %v302 = vld [vmem:[%s1 + $0x8d0] sm:$0xff]
    %v303 = vld [vmem:[%s1 + $0x8d8] sm:$0xff]
    %v304 = vld [vmem:[%s1 + $0x8e0] sm:$0xff]
    %v305 = vld [vmem:[%s1 + $0x8e8] sm:$0xff]
    %v306 = vld [vmem:[%s1 + $0x8f0] sm:$0xff]
    %v307 = vld [vmem:[%s1 + $0x8f8] sm:$0xff]
    %v308 = vld [vmem:[%s1 + $0x900] sm:$0xff]
    %v309 = vld [vmem:[%s1 + $0x908] sm:$0xff]
    %v310 = vld [vmem:[%s1 + $0x910] sm:$0xff]
    %v311 = vld [vmem:[%s1 + $0x918] sm:$0xff]
    %v312 = vld [vmem:[%s1 + $0x920] sm:$0xff]
    %v313 = vld [vmem:[%s1 + $0x928] sm:$0xff]
    %v314 = vld [vmem:[%s1 + $0x930] sm:$0xff]
    %v315 = vld [vmem:[%s1 + $0x938] sm:$0xff]
    %v316 = vld [vmem:[%s1 + $0x940] sm:$0xff]
    %v317 = vld [vmem:[%s1 + $0x948] sm:$0xff]
    %v318 = vld [vmem:[%s1 + $0x950] sm:$0xff]
    %v319 = vld [vmem:[%s1 + $0x958] sm:$0xff]
    %v320 = vld [vmem:[%s1 + $0x960] sm:$0xff]
    %v321 = vld [vmem:[%s1 + $0x968] sm:$0xff]
    %v322 = vld [vmem:[%s1 + $0x970] sm:$0xff]
    %v323 = vld [vmem:[%s1 + $0x978] sm:$0xff]
    %v324 = vld [vmem:[%s1 + $0x980] sm:$0xff]
    %v325 = vld [vmem:[%s1 + $0x988] sm:$0xff]
    %v326 = vld [vmem:[%s1 + $0x990] sm:$0xff]
    %v327 = vld [vmem:[%s1 + $0x998] sm:$0xff]
    %v328 = vld [vmem:[%s1 + $0x9a0] sm:$0xff]
    %v329 = vld [vmem:[%s1 + $0x9a8] sm:$0xff]
    %v330 = vld [vmem:[%s1 + $0x9b0] sm:$0xff]
    %v331 = vld [vmem:[%s1 + $0x9b8] sm:$0xff]
    %v332 = vld [vmem:[%s1 + $0x9c0] sm:$0xff]
    %v333 = vld [vmem:[%s1 + $0x9c8] sm:$0xff]
    %v334 = vld [vmem:[%s1 + $0x9d0] sm:$0xff]
    %v335 = vld [vmem:[%s1 + $0x9d8] sm:$0xff]
    %v336 = vld [vmem:[%s1 + $0x9e0] sm:$0xff]
    %v337 = vld [vmem:[%s1 + $0x9e8] sm:$0xff]
    %v338 = vld [vmem:[%s1 + $0x9f0] sm:$0xff]
    %v339 = vld [vmem:[%s1 + $0x9f8] sm:$0xff]
    %v340 = vld [vmem:[%s1 + $0xa00] sm:$0xff]
    %v341 = vld [vmem:[%s1 + $0xa08] sm:$0xff]
    %v342 = vld [vmem:[%s1 + $0xa10] sm:$0xff]
    %v343 = vld [vmem:[%s1 + $0xa18] sm:$0xff]
    %v344 = vld [vmem:[%s1 + $0xa20] sm:$0xff]
    %v345 = vld [vmem:[%s1 + $0xa28] sm:$0xff]
    %v346 = vld [vmem:[%s1 + $0xa30] sm:$0xff]
    %v347 = vld [vmem:[%s1 + $0xa38] sm:$0xff]
    %v348 = vld [vmem:[%s1 + $0xa40] sm:$0xff]
    %v349 = vld [vmem:[%s1 + $0xa48] sm:$0xff]
    %v350 = vld [vmem:[%s1 + $0xa50] sm:$0xff]
    %v351 = vld [vmem:[%s1 + $0xa58] sm:$0xff]
    %v352 = vld [vmem:[%s1 + $0xa60] sm:$0xff]
    %v353 = vld [vmem:[%s1 + $0xa68] sm:$0xff]
    %v354 = vld [vmem:[%s1 + $0xa70] sm:$0xff]
    %v355 = vld [vmem:[%s1 + $0xa78] sm:$0xff]
    %v356 = vld [vmem:[%s1 + $0xa80] sm:$0xff]
    %v357 = vld [vmem:[%s1 + $0xa88] sm:$0xff]
    %v358 = vld [vmem:[%s1 + $0xa90] sm:$0xff]
    %v359 = vld [vmem:[%s1 + $0xa98] sm:$0xff]
    %v360 = vld [vmem:[%s1 + $0xaa0] sm:$0xff]
    %v361 = vld [vmem:[%s1 + $0xaa8] sm:$0xff]
    %v362 = vld [vmem:[%s1 + $0xab0] sm:$0xff]
    %v363 = vld [vmem:[%s1 + $0xab8] sm:$0xff]
    %v364 = vld [vmem:[%s1 + $0xac0] sm:$0xff]
    %v365 = vld [vmem:[%s1 + $0xac8] sm:$0xff]
    %v366 = vld [vmem:[%s1 + $0xad0] sm:$0xff]
    %v367 = vld [vmem:[%s1 + $0xad8] sm:$0xff]
    %v368 = vld [vmem:[%s1 + $0xae0] sm:$0xff]
    %v369 = vld [vmem:[%s1 + $0xae8] sm:$0xff]
    %v370 = vld [vmem:[%s1 + $0xaf0] sm:$0xff]
    %v371 = vld [vmem:[%s1 + $0xaf8] sm:$0xff]
    %v372 = vld [vmem:[%s1 + $0xb00] sm:$0xff]
    %v373 = vld [vmem:[%s1 + $0xb08] sm:$0xff]
    %v374 = vld [vmem:[%s1 + $0xb10] sm:$0xff]
    %v375 = vld [vmem:[%s1 + $0xb18] sm:$0xff]
    %v376 = vld [vmem:[%s1 + $0xb20] sm:$0xff]
    %v377 = vld [vmem:[%s1 + $0xb28] sm:$0xff]
    %v378 = vld [vmem:[%s1 + $0xb30] sm:$0xff]
    %v379 = vld [vmem:[%s1 + $0xb38] sm:$0xff]
    %v380 = vld [vmem:[%s1 + $0xb40] sm:$0xff]
    %v381 = vld [vmem:[%s1 + $0xb48] sm:$0xff]
    %v382 = vld [vmem:[%s1 + $0xb50] sm:$0xff]
    %v383 = vld [vmem:[%s1 + $0xb58] sm:$0xff]
    %v384 = vld [vmem:[%s1 + $0xb60] sm:$0xff]
    %v385 = vld [vmem:[%s1 + $0xb68] sm:$0xff]
    %v386 = vld [vmem:[%s1 + $0xb70] sm:$0xff]
    %v387 = vld [vmem:[%s1 + $0xb78] sm:$0xff]
    %v388 = vld [vmem:[%s1 + $0xb80] sm:$0xff]
    %v389 = vld [vmem:[%s1 + $0xb88] sm:$0xff]
    %v390 = vld [vmem:[%s1 + $0xb90] sm:$0xff]
    %v391 = vld [vmem:[%s1 + $0xb98] sm:$0xff]
    %v392 = vld [vmem:[%s1 + $0xba0] sm:$0xff]
    %v393 = vld [vmem:[%s1 + $0xba8] sm:$0xff]
    %v394 = vld [vmem:[%s1 + $0xbb0] sm:$0xff]
    %v395 = vld [vmem:[%s1 + $0xbb8] sm:$0xff]
    %v396 = vld [vmem:[%s1 + $0xbc0] sm:$0xff]
    %v397 = vld [vmem:[%s1 + $0xbc8] sm:$0xff]
    %v398 = vld [vmem:[%s1 + $0xbd0] sm:$0xff]
    %v399 = vld [vmem:[%s1 + $0xbd8] sm:$0xff]
    %v400 = vld [vmem:[%s1 + $0xbe0] sm:$0xff]
    %v401 = vld [vmem:[%s1 + $0xbe8] sm:$0xff]
    %v402 = vld [vmem:[%s1 + $0xbf0] sm:$0xff]
    %v403 = vld [vmem:[%s1 + $0xbf8] sm:$0xff]
    %v404 = vld [vmem:[%s1 + $0xc00] sm:$0xff]
    %v405 = vld [vmem:[%s1 + $0xc08] sm:$0xff]
    %v406 = vld [vmem:[%s1 + $0xc10] sm:$0xff]
    %v407 = vld [vmem:[%s1 + $0xc18] sm:$0xff]
    %v408 = vld [vmem:[%s1 + $0xc20] sm:$0xff]
    %v409 = vld [vmem:[%s1 + $0xc28] sm:$0xff]
    %v410 = vld [vmem:[%s1 + $0xc30] sm:$0xff]
    %v411 = vld [vmem:[%s1 + $0xc38] sm:$0xff]
    %v412 = vld [vmem:[%s1 + $0xc40] sm:$0xff]
    %v413 = vld [vmem:[%s1 + $0xc48] sm:$0xff]
    %v414 = vld [vmem:[%s1 + $0xc50] sm:$0xff]
    %v415 = vld [vmem:[%s1 + $0xc58] sm:$0xff]
    %v416 = vld [vmem:[%s1 + $0xc60] sm:$0xff]
    %v417 = vld [vmem:[%s1 + $0xc68] sm:$0xff]
    %v418 = vld [vmem:[%s1 + $0xc70] sm:$0xff]
    %v419 = vld [vmem:[%s1 + $0xc78] sm:$0xff]
    %v420 = vld [vmem:[%s1 + $0xc80] sm:$0xff]
    %v421 = vld [vmem:[%s1 + $0xc88] sm:$0xff]
    %v422 = vld [vmem:[%s1 + $0xc90] sm:$0xff]
    %v423 = vld [vmem:[%s1 + $0xc98] sm:$0xff]
    %v424 = vld [vmem:[%s1 + $0xca0] sm:$0xff]
    %v425 = vld [vmem:[%s1 + $0xca8] sm:$0xff]
    %v426 = vld [vmem:[%s1 + $0xcb0] sm:$0xff]
    %v427 = vld [vmem:[%s1 + $0xcb8] sm:$0xff]
    %v428 = vld [vmem:[%s1 + $0xcc0] sm:$0xff]
    %v429 = vld [vmem:[%s1 + $0xcc8] sm:$0xff]
    %v430 = vld [vmem:[%s1 + $0xcd0] sm:$0xff]
    %v431 = vld [vmem:[%s1 + $0xcd8] sm:$0xff]
    %v432 = vld [vmem:[%s1 + $0xce0] sm:$0xff]
    %v433 = vld [vmem:[%s1 + $0xce8] sm:$0xff]
    %v434 = vld [vmem:[%s1 + $0xcf0] sm:$0xff]
    %v435 = vld [vmem:[%s1 + $0xcf8] sm:$0xff]
    %v436 = vld [vmem:[%s1 + $0xd00] sm:$0xff]
    %v437 = vld [vmem:[%s1 + $0xd08] sm:$0xff]
    %v438 = vld [vmem:[%s1 + $0xd10] sm:$0xff]
    %v439 = vld [vmem:[%s1 + $0xd18] sm:$0xff]
    %v440 = vld [vmem:[%s1 + $0xd20] sm:$0xff]
    %v441 = vld [vmem:[%s1 + $0xd28] sm:$0xff]
    %v442 = vld [vmem:[%s1 + $0xd30] sm:$0xff]
    %v443 = vld [vmem:[%s1 + $0xd38] sm:$0xff]
    %v444 = vld [vmem:[%s1 + $0xd40] sm:$0xff]
    %v445 = vld [vmem:[%s1 + $0xd48] sm:$0xff]
    %v446 = vld [vmem:[%s1 + $0xd50] sm:$0xff]
    %v447 = vld [vmem:[%s1 + $0xd58] sm:$0xff]
    %v448 = vld [vmem:[%s1 + $0xd60] sm:$0xff]
    %v449 = vld [vmem:[%s1 + $0xd68] sm:$0xff]
    %v450 = vld [vmem:[%s1 + $0xd70] sm:$0xff]
    %v451 = vld [vmem:[%s1 + $0xd78] sm:$0xff]
    %v452 = vld [vmem:[%s1 + $0xd80] sm:$0xff]
    %v453 = vld [vmem:[%s1 + $0xd88] sm:$0xff]
    %v454 = vld [vmem:[%s1 + $0xd90] sm:$0xff]
    %v455 = vld [vmem:[%s1 + $0xd98] sm:$0xff]
    %v456 = vld [vmem:[%s1 + $0xda0] sm:$0xff]
    %v457 = vld [vmem:[%s1 + $0xda8] sm:$0xff]
    %v458 = vld [vmem:[%s1 + $0xdb0] sm:$0xff]
    %v459 = vld [vmem:[%s1 + $0xdb8] sm:$0xff]
    %v460 = vld [vmem:[%s1 + $0xdc0] sm:$0xff]
    %v461 = vld [vmem:[%s1 + $0xdc8] sm:$0xff]
    %v462 = vld [vmem:[%s1 + $0xdd0] sm:$0xff]
    %v463 = vld [vmem:[%s1 + $0xdd8] sm:$0xff]
    %v464 = vld [vmem:[%s1 + $0xde0] sm:$0xff]
    %v465 = vld [vmem:[%s1 + $0xde8] sm:$0xff]
    %v466 = vld [vmem:[%s1 + $0xdf0] sm:$0xff]
    %v467 = vld [vmem:[%s1 + $0xdf8] sm:$0xff]
    %v468 = vld [vmem:[%s1 + $0xe00] sm:$0xff]
    %v469 = vld [vmem:[%s1 + $0xe08] sm:$0xff]
    %v470 = vld [vmem:[%s1 + $0xe10] sm:$0xff]
    %v471 = vld [vmem:[%s1 + $0xe18] sm:$0xff]
    %v472 = vld [vmem:[%s1 + $0xe20] sm:$0xff]
    %v473 = vld [vmem:[%s1 + $0xe28] sm:$0xff]
    %v474 = vld [vmem:[%s1 + $0xe30] sm:$0xff]
    %v475 = vld [vmem:[%s1 + $0xe38] sm:$0xff]
    %v476 = vld [vmem:[%s1 + $0xe40] sm:$0xff]
    %v477 = vld [vmem:[%s1 + $0xe48] sm:$0xff]
    %v478 = vld [vmem:[%s1 + $0xe50] sm:$0xff]
    %v479 = vld [vmem:[%s1 + $0xe58] sm:$0xff]
    %v480 = vld [vmem:[%s1 + $0xe60] sm:$0xff]
    %v481 = vld [vmem:[%s1 + $0xe68] sm:$0xff]
    %v482 = vld [vmem:[%s1 + $0xe70] sm:$0xff]
    %v483 = vld [vmem:[%s1 + $0xe78] sm:$0xff]
    %v484 = vld [vmem:[%s1 + $0xe80] sm:$0xff]
    %v485 = vld [vmem:[%s1 + $0xe88] sm:$0xff]
    %v486 = vld [vmem:[%s1 + $0xe90] sm:$0xff]
    %v487 = vld [vmem:[%s1 + $0xe98] sm:$0xff]
    %v488 = vld [vmem:[%s1 + $0xea0] sm:$0xff]
    %v489 = vld [vmem:[%s1 + $0xea8] sm:$0xff]
    %v490 = vld [vmem:[%s1 + $0xeb0] sm:$0xff]
    %v491 = vld [vmem:[%s1 + $0xeb8] sm:$0xff]
    %v492 = vld [vmem:[%s1 + $0xec0] sm:$0xff]
    %v493 = vld [vmem:[%s1 + $0xec8] sm:$0xff]
    %v494 = vld [vmem:[%s1 + $0xed0] sm:$0xff]
    %v495 = vld [vmem:[%s1 + $0xed8] sm:$0xff]
    %v496 = vld [vmem:[%s1 + $0xee0] sm:$0xff]
    %v497 = vld [vmem:[%s1 + $0xee8] sm:$0xff]
    %v498 = vld [vmem:[%s1 + $0xef0] sm:$0xff]
    %v499 = vld [vmem:[%s1 + $0xef8] sm:$0xff]
    %v500 = vld [vmem:[%s1 + $0xf00] sm:$0xff]
    %v501 = vld [vmem:[%s1 + $0xf08] sm:$0xff]
    %v502 = vld [vmem:[%s1 + $0xf10] sm:$0xff]
    %v503 = vld [vmem:[%s1 + $0xf18] sm:$0xff]
    %v504 = vld [vmem:[%s1 + $0xf20] sm:$0xff]
    %v505 = vld [vmem:[%s1 + $0xf28] sm:$0xff]
    %v506 = vld [vmem:[%s1 + $0xf30] sm:$0xff]
    %v507 = vld [vmem:[%s1 + $0xf38] sm:$0xff]
    %v508 = vld [vmem:[%s1 + $0xf40] sm:$0xff]
    %v509 = vld [vmem:[%s1 + $0xf48] sm:$0xff]
    %v510 = vld [vmem:[%s1 + $0xf50] sm:$0xff]
    %v511 = vld [vmem:[%s1 + $0xf58] sm:$0xff]
    %v512 = vld [vmem:[%s1 + $0xf60] sm:$0xff]
    %v513 = vld [vmem:[%s1 + $0xf68] sm:$0xff]
    %v514 = vld [vmem:[%s1 + $0xf70] sm:$0xff]
    %v515 = vld [vmem:[%s1 + $0xf78] sm:$0xff]
    %v516 = vld [vmem:[%s1 + $0xf80] sm:$0xff]
    %v517 = vld [vmem:[%s1 + $0xf88] sm:$0xff]
    %v518 = vld [vmem:[%s1 + $0xf90] sm:$0xff]
    %v519 = vld [vmem:[%s1 + $0xf98] sm:$0xff]
    %v520 = vld [vmem:[%s1 + $0xfa0] sm:$0xff]
    %v521 = vld [vmem:[%s1 + $0xfa8] sm:$0xff]
    %v522 = vld [vmem:[%s1 + $0xfb0] sm:$0xff]
    %v523 = vld [vmem:[%s1 + $0xfb8] sm:$0xff]
    %v524 = vld [vmem:[%s1 + $0xfc0] sm:$0xff]
    %v525 = vld [vmem:[%s1 + $0xfc8] sm:$0xff]
    %v526 = vld [vmem:[%s1 + $0xfd0] sm:$0xff]
    %v527 = vld [vmem:[%s1 + $0xfd8] sm:$0xff]
    %v528 = vld [vmem:[%s1 + $0xfe0] sm:$0xff]
    %v529 = vld [vmem:[%s1 + $0xfe8] sm:$0xff]
    %v530 = vld [vmem:[%s1 + $0xff0] sm:$0xff]
    %v531 = vld [vmem:[%s1 + $0xff8] sm:$0xff]
    %v532 = vld [vmem:[%s1 + $0x1000] sm:$0xff]
    %v533 = vld [vmem:[%s1 + $0x1008] sm:$0xff]
    %v534 = vld [vmem:[%s1 + $0x1010] sm:$0xff]
    %v535 = vld [vmem:[%s1 + $0x1018] sm:$0xff]
    %v536 = vld [vmem:[%s1 + $0x1020] sm:$0xff]
    %v537 = vld [vmem:[%s1 + $0x1028] sm:$0xff]
    %v538 = vld [vmem:[%s1 + $0x1030] sm:$0xff]
    %v539 = vld [vmem:[%s1 + $0x1038] sm:$0xff]
    %v540 = vld [vmem:[%s1 + $0x1040] sm:$0xff]
    %v541 = vld [vmem:[%s1 + $0x1048] sm:$0xff]
    %v542 = vld [vmem:[%s1 + $0x1050] sm:$0xff]
    %v543 = vld [vmem:[%s1 + $0x1058] sm:$0xff]
    %v544 = vld [vmem:[%s1 + $0x1060] sm:$0xff]
    %v545 = vld [vmem:[%s1 + $0x1068] sm:$0xff]
    %v546 = vld [vmem:[%s1 + $0x1070] sm:$0xff]
    %v547 = vld [vmem:[%s1 + $0x1078] sm:$0xff]
    %v548 = vld [vmem:[%s1 + $0x1080] sm:$0xff]
    %v549 = vld [vmem:[%s1 + $0x1088] sm:$0xff]
    %v550 = vld [vmem:[%s1 + $0x1090] sm:$0xff]
    %v551 = vld [vmem:[%s1 + $0x1098] sm:$0xff]
    %v552 = vld [vmem:[%s1 + $0x10a0] sm:$0xff]
    %v553 = vld [vmem:[%s1 + $0x10a8] sm:$0xff]
    %v554 = vld [vmem:[%s1 + $0x10b0] sm:$0xff]
    %v555 = vld [vmem:[%s1 + $0x10b8] sm:$0xff]
    %v556 = vld [vmem:[%s1 + $0x10c0] sm:$0xff]
    %v557 = vld [vmem:[%s1 + $0x10c8] sm:$0xff]
    %v558 = vld [vmem:[%s1 + $0x10d0] sm:$0xff]
    %v559 = vld [vmem:[%s1 + $0x10d8] sm:$0xff]
    %v560 = vld [vmem:[%s1 + $0x10e0] sm:$0xff]
    %v561 = vld [vmem:[%s1 + $0x10e8] sm:$0xff]
    %v562 = vld [vmem:[%s1 + $0x10f0] sm:$0xff]
    %v563 = vld [vmem:[%s1 + $0x10f8] sm:$0xff]
    %v564 = vld [vmem:[%s1 + $0x1100] sm:$0xff]
    %v565 = vld [vmem:[%s1 + $0x1108] sm:$0xff]
    %v566 = vld [vmem:[%s1 + $0x1110] sm:$0xff]
    %v567 = vld [vmem:[%s1 + $0x1118] sm:$0xff]
    %v568 = vld [vmem:[%s1 + $0x1120] sm:$0xff]
    %v569 = vld [vmem:[%s1 + $0x1128] sm:$0xff]
    %v570 = vld [vmem:[%s1 + $0x1130] sm:$0xff]
    %v571 = vld [vmem:[%s1 + $0x1138] sm:$0xff]
    %v572 = vld [vmem:[%s1 + $0x1140] sm:$0xff]
    %v573 = vld [vmem:[%s1 + $0x1148] sm:$0xff]
    %v574 = vld [vmem:[%s1 + $0x1150] sm:$0xff]
    %v575 = vld [vmem:[%s1 + $0x1158] sm:$0xff]
    %v576 = vld [vmem:[%s1 + $0x1160] sm:$0xff]
    %v577 = vld [vmem:[%s1 + $0x1168] sm:$0xff]
    %v578 = vld [vmem:[%s1 + $0x1170] sm:$0xff]
    %v579 = vld [vmem:[%s1 + $0x1178] sm:$0xff]
    %v580 = vld [vmem:[%s1 + $0x1180] sm:$0xff]
    %v581 = vld [vmem:[%s1 + $0x1188] sm:$0xff]
    %v582 = vld [vmem:[%s1 + $0x1190] sm:$0xff]
    %v583 = vld [vmem:[%s1 + $0x1198] sm:$0xff]
    %v584 = vld [vmem:[%s1 + $0x11a0] sm:$0xff]
    %v585 = vld [vmem:[%s1 + $0x11a8] sm:$0xff]
    %v586 = vld [vmem:[%s1 + $0x11b0] sm:$0xff]
    %v587 = vld [vmem:[%s1 + $0x11b8] sm:$0xff]
    %v588 = vld [vmem:[%s1 + $0x11c0] sm:$0xff]
    %v589 = vld [vmem:[%s1 + $0x11c8] sm:$0xff]
    %v590 = vld [vmem:[%s1 + $0x11d0] sm:$0xff]
    %v591 = vld [vmem:[%s1 + $0x11d8] sm:$0xff]
    %v592 = vld [vmem:[%s1 + $0x11e0] sm:$0xff]
    %v593 = vld [vmem:[%s1 + $0x11e8] sm:$0xff]
    %v594 = vld [vmem:[%s1 + $0x11f0] sm:$0xff]
    %v595 = vld [vmem:[%s1 + $0x11f8] sm:$0xff]
    %v596 = vld [vmem:[%s1 + $0x1200] sm:$0xff]
    %v597 = vld [vmem:[%s1 + $0x1208] sm:$0xff]
    %v598 = vld [vmem:[%s1 + $0x1210] sm:$0xff]
    %v599 = vld [vmem:[%s1 + $0x1218] sm:$0xff]
    %v600 = vld [vmem:[%s1 + $0x1220] sm:$0xff]
    %v601 = vld [vmem:[%s1 + $0x1228] sm:$0xff]
    %v602 = vld [vmem:[%s1 + $0x1230] sm:$0xff]
    %v603 = vld [vmem:[%s1 + $0x1238] sm:$0xff]
    %v604 = vld [vmem:[%s1 + $0x1240] sm:$0xff]
    %v605 = vld [vmem:[%s1 + $0x1248] sm:$0xff]
    %v606 = vld [vmem:[%s1 + $0x1250] sm:$0xff]
    %v607 = vld [vmem:[%s1 + $0x1258] sm:$0xff]
    %v608 = vld [vmem:[%s1 + $0x1260] sm:$0xff]
    %v609 = vld [vmem:[%s1 + $0x1268] sm:$0xff]
    %v610 = vld [vmem:[%s1 + $0x1270] sm:$0xff]
    %v611 = vld [vmem:[%s1 + $0x1278] sm:$0xff]
    %v612 = vld [vmem:[%s1 + $0x1280] sm:$0xff]
    %v613 = vld [vmem:[%s1 + $0x1288] sm:$0xff]
    %v614 = vld [vmem:[%s1 + $0x1290] sm:$0xff]
    %v615 = vld [vmem:[%s1 + $0x1298] sm:$0xff]
    %v616 = vld [vmem:[%s1 + $0x12a0] sm:$0xff]
    %v617 = vld [vmem:[%s1 + $0x12a8] sm:$0xff]
    %v618 = vld [vmem:[%s1 + $0x12b0] sm:$0xff]
    %v619 = vld [vmem:[%s1 + $0x12b8] sm:$0xff]
    %v620 = vld [vmem:[%s1 + $0x12c0] sm:$0xff]
    %v621 = vld [vmem:[%s1 + $0x12c8] sm:$0xff]
    %v622 = vld [vmem:[%s1 + $0x12d0] sm:$0xff]
    %v623 = vld [vmem:[%s1 + $0x12d8] sm:$0xff]
    %v624 = vld [vmem:[%s1 + $0x12e0] sm:$0xff]
    %v625 = vld [vmem:[%s1 + $0x12e8] sm:$0xff]
    %v626 = vld [vmem:[%s1 + $0x12f0] sm:$0xff]
    %v627 = vld [vmem:[%s1 + $0x12f8] sm:$0xff]
    %v628 = vld [vmem:[%s1 + $0x1300] sm:$0xff]
    %v629 = vld [vmem:[%s1 + $0x1308] sm:$0xff]
    %v630 = vld [vmem:[%s1 + $0x1310] sm:$0xff]
    %v631 = vld [vmem:[%s1 + $0x1318] sm:$0xff]
    %v632 = vld [vmem:[%s1 + $0x1320] sm:$0xff]
    %v633 = vld [vmem:[%s1 + $0x1328] sm:$0xff]
    %v634 = vld [vmem:[%s1 + $0x1330] sm:$0xff]
    %v635 = vld [vmem:[%s1 + $0x1338] sm:$0xff]
    %v636 = vld [vmem:[%s1 + $0x1340] sm:$0xff]
    %v637 = vld [vmem:[%s1 + $0x1348] sm:$0xff]
    %v638 = vld [vmem:[%s1 + $0x1350] sm:$0xff]
    %v639 = vld [vmem:[%s1 + $0x1358] sm:$0xff]
    %v640 = vld [vmem:[%s1 + $0x1360] sm:$0xff]
    %v641 = vld [vmem:[%s1 + $0x1368] sm:$0xff]
    %v642 = vld [vmem:[%s1 + $0x1370] sm:$0xff]
    %v643 = vld [vmem:[%s1 + $0x1378] sm:$0xff]
    %v644 = vld [vmem:[%s1 + $0x1380] sm:$0xff]
    %v645 = vld [vmem:[%s1 + $0x1388] sm:$0xff]
    %v646 = vld [vmem:[%s1 + $0x1390] sm:$0xff]
    %v647 = vld [vmem:[%s1 + $0x1398] sm:$0xff]
    %v648 = vld [vmem:[%s1 + $0x13a0] sm:$0xff]
    %v649 = vld [vmem:[%s1 + $0x13a8] sm:$0xff]
    %v650 = vld [vmem:[%s1 + $0x13b0] sm:$0xff]
    %v651 = vld [vmem:[%s1 + $0x13b8] sm:$0xff]
    %v652 = vld [vmem:[%s1 + $0x13c0] sm:$0xff]
    %v653 = vld [vmem:[%s1 + $0x13c8] sm:$0xff]
    %v654 = vld [vmem:[%s1 + $0x13d0] sm:$0xff]
    %v655 = vld [vmem:[%s1 + $0x13d8] sm:$0xff]
    %v656 = vld [vmem:[%s1 + $0x13e0] sm:$0xff]
    %v657 = vld [vmem:[%s1 + $0x13e8] sm:$0xff]
    %v658 = vld [vmem:[%s1 + $0x13f0] sm:$0xff]
    %v659 = vld [vmem:[%s1 + $0x13f8] sm:$0xff]
    %v660 = vld [vmem:[%s1 + $0x1400] sm:$0xff]
    %v661 = vld [vmem:[%s1 + $0x1408] sm:$0xff]
    %v662 = vld [vmem:[%s1 + $0x1410] sm:$0xff]
    %v663 = vld [vmem:[%s1 + $0x1418] sm:$0xff]
    %v664 = vld [vmem:[%s1 + $0x1420] sm:$0xff]
    %v665 = vld [vmem:[%s1 + $0x1428] sm:$0xff]
    %v666 = vld [vmem:[%s1 + $0x1430] sm:$0xff]
    %v667 = vld [vmem:[%s1 + $0x1438] sm:$0xff]
    %v668 = vld [vmem:[%s1 + $0x1440] sm:$0xff]
    %v669 = vld [vmem:[%s1 + $0x1448] sm:$0xff]
    %v670 = vld [vmem:[%s1 + $0x1450] sm:$0xff]
    %v671 = vld [vmem:[%s1 + $0x1458] sm:$0xff]
    %v672 = vld [vmem:[%s1 + $0x1460] sm:$0xff]
    %v673 = vld [vmem:[%s1 + $0x1468] sm:$0xff]
    %v674 = vld [vmem:[%s1 + $0x1470] sm:$0xff]
    %v675 = vld [vmem:[%s1 + $0x1478] sm:$0xff]
    %v676 = vld [vmem:[%s1 + $0x1480] sm:$0xff]
    %v677 = vld [vmem:[%s1 + $0x1488] sm:$0xff]
    %v678 = vld [vmem:[%s1 + $0x1490] sm:$0xff]
    %v679 = vld [vmem:[%s1 + $0x1498] sm:$0xff]
    %v680 = vld [vmem:[%s1 + $0x14a0] sm:$0xff]
    %v681 = vld [vmem:[%s1 + $0x14a8] sm:$0xff]
    %v682 = vld [vmem:[%s1 + $0x14b0] sm:$0xff]
    %v683 = vld [vmem:[%s1 + $0x14b8] sm:$0xff]
    %v684 = vld [vmem:[%s1 + $0x14c0] sm:$0xff]
    %v685 = vld [vmem:[%s1 + $0x14c8] sm:$0xff]
    %v686 = vld [vmem:[%s1 + $0x14d0] sm:$0xff]
    %v687 = vld [vmem:[%s1 + $0x14d8] sm:$0xff]
    %v688 = vld [vmem:[%s1 + $0x14e0] sm:$0xff]
    %v689 = vld [vmem:[%s1 + $0x14e8] sm:$0xff]
    %v690 = vld [vmem:[%s1 + $0x14f0] sm:$0xff]
    %v691 = vld [vmem:[%s1 + $0x14f8] sm:$0xff]
    %v692 = vld [vmem:[%s1 + $0x1500] sm:$0xff]
    %v693 = vld [vmem:[%s1 + $0x1508] sm:$0xff]
    %v694 = vld [vmem:[%s1 + $0x1510] sm:$0xff]
    %v695 = vld [vmem:[%s1 + $0x1518] sm:$0xff]
    %v696 = vld [vmem:[%s1 + $0x1520] sm:$0xff]
    %v697 = vld [vmem:[%s1 + $0x1528] sm:$0xff]
    %v698 = vld [vmem:[%s1 + $0x1530] sm:$0xff]
    %v699 = vld [vmem:[%s1 + $0x1538] sm:$0xff]
    %v700 = vld [vmem:[%s1 + $0x1540] sm:$0xff]
    %v701 = vld [vmem:[%s1 + $0x1548] sm:$0xff]
    %v702 = vld [vmem:[%s1 + $0x1550] sm:$0xff]
    %v703 = vld [vmem:[%s1 + $0x1558] sm:$0xff]
    %v704 = vld [vmem:[%s1 + $0x1560] sm:$0xff]
    %v705 = vld [vmem:[%s1 + $0x1568] sm:$0xff]
    %v706 = vld [vmem:[%s1 + $0x1570] sm:$0xff]
    %v707 = vld [vmem:[%s1 + $0x1578] sm:$0xff]
    %v708 = vld [vmem:[%s1 + $0x1580] sm:$0xff]
    %v709 = vld [vmem:[%s1 + $0x1588] sm:$0xff]
    %v710 = vld [vmem:[%s1 + $0x1590] sm:$0xff]
    %v711 = vld [vmem:[%s1 + $0x1598] sm:$0xff]
    %v712 = vld [vmem:[%s1 + $0x15a0] sm:$0xff]
    %v713 = vld [vmem:[%s1 + $0x15a8] sm:$0xff]
    %v714 = vld [vmem:[%s1 + $0x15b0] sm:$0xff]
    %v715 = vld [vmem:[%s1 + $0x15b8] sm:$0xff]
    %v716 = vld [vmem:[%s1 + $0x15c0] sm:$0xff]
    %v717 = vld [vmem:[%s1 + $0x15c8] sm:$0xff]
    %v718 = vld [vmem:[%s1 + $0x15d0] sm:$0xff]
    %v719 = vld [vmem:[%s1 + $0x15d8] sm:$0xff]
    %v720 = vld [vmem:[%s1 + $0x15e0] sm:$0xff]
    %v721 = vld [vmem:[%s1 + $0x15e8] sm:$0xff]
    %v722 = vld [vmem:[%s1 + $0x15f0] sm:$0xff]
    %v723 = vld [vmem:[%s1 + $0x15f8] sm:$0xff]
    %v724 = vld [vmem:[%s1 + $0x1600] sm:$0xff]
    %v725 = vld [vmem:[%s1 + $0x1608] sm:$0xff]
    %v726 = vld [vmem:[%s1 + $0x1610] sm:$0xff]
    %v727 = vld [vmem:[%s1 + $0x1618] sm:$0xff]
    %v728 = vld [vmem:[%s1 + $0x1620] sm:$0xff]
    %v729 = vld [vmem:[%s1 + $0x1628] sm:$0xff]
    %v730 = vld [vmem:[%s1 + $0x1630] sm:$0xff]
    %v731 = vld [vmem:[%s1 + $0x1638] sm:$0xff]
    %v732 = vld [vmem:[%s1 + $0x1640] sm:$0xff]
    %v733 = vld [vmem:[%s1 + $0x1648] sm:$0xff]
    %v734 = vld [vmem:[%s1 + $0x1650] sm:$0xff]
    %v735 = vld [vmem:[%s1 + $0x1658] sm:$0xff]
    %v736 = vld [vmem:[%s1 + $0x1660] sm:$0xff]
    %v737 = vld [vmem:[%s1 + $0x1668] sm:$0xff]
    %v738 = vld [vmem:[%s1 + $0x1670] sm:$0xff]
    %v739 = vld [vmem:[%s1 + $0x1678] sm:$0xff]
    %v740 = vld [vmem:[%s1 + $0x1680] sm:$0xff]
    %v741 = vld [vmem:[%s1 + $0x1688] sm:$0xff]
    %v742 = vld [vmem:[%s1 + $0x1690] sm:$0xff]
    %v743 = vld [vmem:[%s1 + $0x1698] sm:$0xff]
    %v744 = vld [vmem:[%s1 + $0x16a0] sm:$0xff]
    %v745 = vld [vmem:[%s1 + $0x16a8] sm:$0xff]
    %v746 = vld [vmem:[%s1 + $0x16b0] sm:$0xff]
    %v747 = vld [vmem:[%s1 + $0x16b8] sm:$0xff]
    %v748 = vld [vmem:[%s1 + $0x16c0] sm:$0xff]
    %v749 = vld [vmem:[%s1 + $0x16c8] sm:$0xff]
    %v750 = vld [vmem:[%s1 + $0x16d0] sm:$0xff]
    %v751 = vld [vmem:[%s1 + $0x16d8] sm:$0xff]
    %v752 = vld [vmem:[%s1 + $0x16e0] sm:$0xff]
    %v753 = vld [vmem:[%s1 + $0x16e8] sm:$0xff]
    %v754 = vld [vmem:[%s1 + $0x16f0] sm:$0xff]
    %v755 = vld [vmem:[%s1 + $0x16f8] sm:$0xff]
    %v756 = vld [vmem:[%s1 + $0x1700] sm:$0xff]
    %v757 = vld [vmem:[%s1 + $0x1708] sm:$0xff]
    %v758 = vld [vmem:[%s1 + $0x1710] sm:$0xff]
    %v759 = vld [vmem:[%s1 + $0x1718] sm:$0xff]
    %v760 = vld [vmem:[%s1 + $0x1720] sm:$0xff]
    %v761 = vld [vmem:[%s1 + $0x1728] sm:$0xff]
    %v762 = vld [vmem:[%s1 + $0x1730] sm:$0xff]
    %v763 = vld [vmem:[%s1 + $0x1738] sm:$0xff]
    %v764 = vld [vmem:[%s1 + $0x1740] sm:$0xff]
    %v765 = vld [vmem:[%s1 + $0x1748] sm:$0xff]
    %v766 = vld [vmem:[%s1 + $0x1750] sm:$0xff]
    %v767 = vld [vmem:[%s1 + $0x1758] sm:$0xff]
    %v768 = vld [vmem:[%s1 + $0x1760] sm:$0xff]
    %v769 = vld [vmem:[%s1 + $0x1768] sm:$0xff]
    %v770 = vld [vmem:[%s1 + $0x1770] sm:$0xff]
    %v771 = vld [vmem:[%s1 + $0x1778] sm:$0xff]
    %v772 = vld [vmem:[%s1 + $0x1780] sm:$0xff]
    %v773 = vld [vmem:[%s1 + $0x1788] sm:$0xff]
    %v774 = vld [vmem:[%s1 + $0x1790] sm:$0xff]
    %v775 = vld [vmem:[%s1 + $0x1798] sm:$0xff]
    %v776 = vld [vmem:[%s1 + $0x17a0] sm:$0xff]
    %v777 = vld [vmem:[%s1 + $0x17a8] sm:$0xff]
    %v778 = vld [vmem:[%s1 + $0x17b0] sm:$0xff]
    %v779 = vld [vmem:[%s1 + $0x17b8] sm:$0xff]
    %v780 = vld [vmem:[%s1 + $0x17c0] sm:$0xff]
    %v781 = vld [vmem:[%s1 + $0x17c8] sm:$0xff]
    %v782 = vld [vmem:[%s1 + $0x17d0] sm:$0xff]
    %v783 = vld [vmem:[%s1 + $0x17d8] sm:$0xff]
    %v784 = vld [vmem:[%s1 + $0x17e0] sm:$0xff]
    %v785 = vld [vmem:[%s1 + $0x17e8] sm:$0xff]
    %v786 = vld [vmem:[%s1 + $0x17f0] sm:$0xff]
    %v787 = vld [vmem:[%s1 + $0x17f8] sm:$0xff]
    %788 = vmatprep.subr.mxu0 %v201
    %789 = vmatpush1.msra.mxu0 %v200
    %790 = vmatprep.subr.mxu0 %v189
    %791 = vmatpush1.msra.mxu0 %v188
    %792 = vmatprep.subr.mxu0 %v177
    %793 = vmatpush1.msra.mxu0 %v176
    %794 = vmatprep.subr.mxu0 %v165
    %795 = vmatpush1.msra.mxu0 %v164
    %796 = vmatprep.subr.mxu0 %v153
    %797 = vmatpush1.msra.mxu0 %v152
    %798 = vmatprep.subr.mxu0 %v141
    %799 = vmatpush1.msra.mxu0 %v140
    %800 = vmatprep.subr.mxu0 %v129
    %801 = vmatpush1.msra.mxu0 %v128
    %802 = vmatprep.subr.mxu0 %v117
    %803 = vmatpush1.msra.mxu0 %v116
    %804 = vmatprep.subr.mxu0 %v105
    %805 = vmatpush1.msra.mxu0 %v104
    %806 = vmatprep.subr.mxu0 %v93
    %807 = vmatpush1.msra.mxu0 %v92
    %808 = vmatprep.subr.mxu0 %v81
    %809 = vmatpush1.msra.mxu0 %v80
    %810 = vmatprep.subr.mxu0 %v69
    %811 = vmatpush1.msra.mxu0 %v68
    %812 = vmatprep.subr.mxu0 %v57
    %813 = vmatpush1.msra.mxu0 %v56
    %814 = vmatprep.subr.mxu0 %v45
    %815 = vmatpush1.msra.mxu0 %v44
    %816 = vmatprep.subr.mxu0 %v33
    %817 = vmatpush1.msra.mxu0 %v32
    %818 = vmatprep.subr.mxu0 %v21
    %819 = vmatpush1.msra.mxu0 %v20
    %820 = vmatprep.subr.mxu0 %v393
    %821 = vmatpush2.msra.mxu0 %v392
    %822 = vmatprep.subr.mxu0 %v381
    %823 = vmatpush2.msra.mxu0 %v380
    %824 = vmatprep.subr.mxu0 %v369
    %825 = vmatpush2.msra.mxu0 %v368
    %826 = vmatprep.subr.mxu0 %v357
    %827 = vmatpush2.msra.mxu0 %v356
    %828 = vmatprep.subr.mxu0 %v345
    %829 = vmatpush2.msra.mxu0 %v344
    %830 = vmatprep.subr.mxu0 %v333
    %831 = vmatpush2.msra.mxu0 %v332
    %832 = vmatprep.subr.mxu0 %v321
    %833 = vmatpush2.msra.mxu0 %v320
    %834 = vmatprep.subr.mxu0 %v309
    %835 = vmatpush2.msra.mxu0 %v308
    %836 = vmatprep.subr.mxu0 %v297
    %837 = vmatpush2.msra.mxu0 %v296
    %838 = vmatprep.subr.mxu0 %v285
    %839 = vmatpush2.msra.mxu0 %v284
    %840 = vmatprep.subr.mxu0 %v273
    %841 = vmatpush2.msra.mxu0 %v272
    %842 = vmatprep.subr.mxu0 %v261
    %843 = vmatpush2.msra.mxu0 %v260
    %844 = vmatprep.subr.mxu0 %v249
    %845 = vmatpush2.msra.mxu0 %v248
    %846 = vmatprep.subr.mxu0 %v237
    %847 = vmatpush2.msra.mxu0 %v236
    %848 = vmatprep.subr.mxu0 %v225
    %849 = vmatpush2.msra.mxu0 %v224
    %850 = vmatprep.subr.mxu0 %v213
    %851 = vmatpush2.msra.mxu0 %v212
    %852 = vmatprep.mubr.f32.mxu0 %v13
    %853 = vmatmul.mubr.f32.gmra.mxu0 %v12
    %v854 = vpop.f32.mrf.mxu0
    %v855 = vadd.f32 0.0, %v854
    %v856 = vpop.f32.mrf.mxu0
    %v857 = vadd.f32 0.0, %v856
    %858 = vmatprep.mubr.f32.mxu0 %v17
    %859 = vmatmul.mubr.f32.gmra.mxu0 %v16
    %v860 = vpop.f32.mrf.mxu0
    %v861 = vadd.f32 0.0, %v860
    %v862 = vpop.f32.mrf.mxu0
    %v863 = vadd.f32 0.0, %v862
    %864 = vdwg.mxu0
    %865 = vmatprep.subr.mxu0 %v585
    %866 = vmatpush1.msra.mxu0 %v584
    %867 = vmatprep.subr.mxu0 %v573
    %868 = vmatpush1.msra.mxu0 %v572
    %869 = vmatprep.subr.mxu0 %v561
    %870 = vmatpush1.msra.mxu0 %v560
    %871 = vmatprep.subr.mxu0 %v549
    %872 = vmatpush1.msra.mxu0 %v548
    %873 = vmatprep.subr.mxu0 %v537
    %874 = vmatpush1.msra.mxu0 %v536
    %875 = vmatprep.subr.mxu0 %v525
    %876 = vmatpush1.msra.mxu0 %v524
    %877 = vmatprep.subr.mxu0 %v513
    %878 = vmatpush1.msra.mxu0 %v512
    %879 = vmatprep.subr.mxu0 %v501
    %880 = vmatpush1.msra.mxu0 %v500
    %881 = vmatprep.subr.mxu0 %v489
    %882 = vmatpush1.msra.mxu0 %v488
    %883 = vmatprep.subr.mxu0 %v477
    %884 = vmatpush1.msra.mxu0 %v476
    %885 = vmatprep.subr.mxu0 %v465
    %886 = vmatpush1.msra.mxu0 %v464
    %887 = vmatprep.subr.mxu0 %v453
    %888 = vmatpush1.msra.mxu0 %v452
    %889 = vmatprep.subr.mxu0 %v441
    %890 = vmatpush1.msra.mxu0 %v440
    %891 = vmatprep.subr.mxu0 %v429
    %892 = vmatpush1.msra.mxu0 %v428
    %893 = vmatprep.subr.mxu0 %v417
    %894 = vmatpush1.msra.mxu0 %v416
    %895 = vmatprep.subr.mxu0 %v405
    %896 = vmatpush1.msra.mxu0 %v404
    %897 = vmatprep.subr.mxu0 %v777
    %898 = vmatpush2.msra.mxu0 %v776
    %899 = vmatprep.subr.mxu0 %v765
    %900 = vmatpush2.msra.mxu0 %v764
    %901 = vmatprep.subr.mxu0 %v753
    %902 = vmatpush2.msra.mxu0 %v752
    %903 = vmatprep.subr.mxu0 %v741
    %904 = vmatpush2.msra.mxu0 %v740
    %905 = vmatprep.subr.mxu0 %v729
    %906 = vmatpush2.msra.mxu0 %v728
    %907 = vmatprep.subr.mxu0 %v717
    %908 = vmatpush2.msra.mxu0 %v716
    %909 = vmatprep.subr.mxu0 %v705
    %910 = vmatpush2.msra.mxu0 %v704
    %911 = vmatprep.subr.mxu0 %v693
    %912 = vmatpush2.msra.mxu0 %v692
    %913 = vmatprep.subr.mxu0 %v681
    %914 = vmatpush2.msra.mxu0 %v680
    %915 = vmatprep.subr.mxu0 %v669
    %916 = vmatpush2.msra.mxu0 %v668
    %917 = vmatprep.subr.mxu0 %v657
    %918 = vmatpush2.msra.mxu0 %v656
    %919 = vmatprep.subr.mxu0 %v645
    %920 = vmatpush2.msra.mxu0 %v644
    %921 = vmatprep.subr.mxu0 %v633
    %922 = vmatpush2.msra.mxu0 %v632
    %923 = vmatprep.subr.mxu0 %v621
    %924 = vmatpush2.msra.mxu0 %v620
    %925 = vmatprep.subr.mxu0 %v609
    %926 = vmatpush2.msra.mxu0 %v608
    %927 = vmatprep.subr.mxu0 %v597
    %928 = vmatpush2.msra.mxu0 %v596
    %929 = vmatprep.mubr.f32.mxu0 %v15
    %930 = vmatmul.mubr.f32.gmra.mxu0 %v14
    %v931 = vpop.f32.mrf.mxu0
    %v932 = vadd.f32 %v855, %v931
    %v933 = vpop.f32.mrf.mxu0
    %v934 = vadd.f32 %v857, %v933
    %935 = vmatprep.mubr.f32.mxu0 %v19
    %936 = vmatmul.mubr.f32.gmra.mxu0 %v18
    %v937 = vpop.f32.mrf.mxu0
    %v938 = vadd.f32 %v861, %v937
    %v939 = vpop.f32.mrf.mxu0
    %v940 = vadd.f32 %v863, %v939
    %941 = vdwg.mxu0
    %942 = vmatprep.subr.mxu0 %v203
    %943 = vmatpush1.msra.mxu0 %v202
    %944 = vmatprep.subr.mxu0 %v191
    %945 = vmatpush1.msra.mxu0 %v190
    %946 = vmatprep.subr.mxu0 %v179
    %947 = vmatpush1.msra.mxu0 %v178
    %948 = vmatprep.subr.mxu0 %v167
    %949 = vmatpush1.msra.mxu0 %v166
    %950 = vmatprep.subr.mxu0 %v155
    %951 = vmatpush1.msra.mxu0 %v154
    %952 = vmatprep.subr.mxu0 %v143
    %953 = vmatpush1.msra.mxu0 %v142
    %954 = vmatprep.subr.mxu0 %v131
    %955 = vmatpush1.msra.mxu0 %v130
    %956 = vmatprep.subr.mxu0 %v119
    %957 = vmatpush1.msra.mxu0 %v118
    %958 = vmatprep.subr.mxu0 %v107
    %959 = vmatpush1.msra.mxu0 %v106
    %960 = vmatprep.subr.mxu0 %v95
    %961 = vmatpush1.msra.mxu0 %v94
    %962 = vmatprep.subr.mxu0 %v83
    %963 = vmatpush1.msra.mxu0 %v82
    %964 = vmatprep.subr.mxu0 %v71
    %965 = vmatpush1.msra.mxu0 %v70
    %966 = vmatprep.subr.mxu0 %v59
    %967 = vmatpush1.msra.mxu0 %v58
    %968 = vmatprep.subr.mxu0 %v47
    %969 = vmatpush1.msra.mxu0 %v46
    %970 = vmatprep.subr.mxu0 %v35
    %971 = vmatpush1.msra.mxu0 %v34
    %972 = vmatprep.subr.mxu0 %v23
    %973 = vmatpush1.msra.mxu0 %v22
    %974 = vmatprep.subr.mxu0 %v395
    %975 = vmatpush2.msra.mxu0 %v394
    %976 = vmatprep.subr.mxu0 %v383
    %977 = vmatpush2.msra.mxu0 %v382
    %978 = vmatprep.subr.mxu0 %v371
    %979 = vmatpush2.msra.mxu0 %v370
    %980 = vmatprep.subr.mxu0 %v359
    %981 = vmatpush2.msra.mxu0 %v358
    %982 = vmatprep.subr.mxu0 %v347
    %983 = vmatpush2.msra.mxu0 %v346
    %984 = vmatprep.subr.mxu0 %v335
    %985 = vmatpush2.msra.mxu0 %v334
    %986 = vmatprep.subr.mxu0 %v323
    %987 = vmatpush2.msra.mxu0 %v322
    %988 = vmatprep.subr.mxu0 %v311
    %989 = vmatpush2.msra.mxu0 %v310
    %990 = vmatprep.subr.mxu0 %v299
    %991 = vmatpush2.msra.mxu0 %v298
    %992 = vmatprep.subr.mxu0 %v287
    %993 = vmatpush2.msra.mxu0 %v286
    %994 = vmatprep.subr.mxu0 %v275
    %995 = vmatpush2.msra.mxu0 %v274
    %996 = vmatprep.subr.mxu0 %v263
    %997 = vmatpush2.msra.mxu0 %v262
    %998 = vmatprep.subr.mxu0 %v251
    %999 = vmatpush2.msra.mxu0 %v250
    %1000 = vmatprep.subr.mxu0 %v239
    %1001 = vmatpush2.msra.mxu0 %v238
    %1002 = vmatprep.subr.mxu0 %v227
    %1003 = vmatpush2.msra.mxu0 %v226
    %1004 = vmatprep.subr.mxu0 %v215
    %1005 = vmatpush2.msra.mxu0 %v214
    %1006 = vmatprep.mubr.f32.mxu0 %v13
    %1007 = vmatmul.mubr.f32.gmra.mxu0 %v12
    %v1008 = vpop.f32.mrf.mxu0
    %v1009 = vadd.f32 0.0, %v1008
    %v1010 = vpop.f32.mrf.mxu0
    %v1011 = vadd.f32 0.0, %v1010
    %1012 = vmatprep.mubr.f32.mxu0 %v17
    %1013 = vmatmul.mubr.f32.gmra.mxu0 %v16
    %v1014 = vpop.f32.mrf.mxu0
    %v1015 = vadd.f32 0.0, %v1014
    %v1016 = vpop.f32.mrf.mxu0
    %v1017 = vadd.f32 0.0, %v1016
    %1018 = vdwg.mxu0
    %1019 = vmatprep.subr.mxu0 %v587
    %1020 = vmatpush1.msra.mxu0 %v586
    %1021 = vmatprep.subr.mxu0 %v575
    %1022 = vmatpush1.msra.mxu0 %v574
    %1023 = vmatprep.subr.mxu0 %v563
    %1024 = vmatpush1.msra.mxu0 %v562
    %1025 = vmatprep.subr.mxu0 %v551
    %1026 = vmatpush1.msra.mxu0 %v550
    %1027 = vmatprep.subr.mxu0 %v539
    %1028 = vmatpush1.msra.mxu0 %v538
    %1029 = vmatprep.subr.mxu0 %v527
    %1030 = vmatpush1.msra.mxu0 %v526
    %1031 = vmatprep.subr.mxu0 %v515
    %1032 = vmatpush1.msra.mxu0 %v514
    %1033 = vmatprep.subr.mxu0 %v503
    %1034 = vmatpush1.msra.mxu0 %v502
    %1035 = vmatprep.subr.mxu0 %v491
    %1036 = vmatpush1.msra.mxu0 %v490
    %1037 = vmatprep.subr.mxu0 %v479
    %1038 = vmatpush1.msra.mxu0 %v478
    %1039 = vmatprep.subr.mxu0 %v467
    %1040 = vmatpush1.msra.mxu0 %v466
    %1041 = vmatprep.subr.mxu0 %v455
    %1042 = vmatpush1.msra.mxu0 %v454
    %1043 = vmatprep.subr.mxu0 %v443
    %1044 = vmatpush1.msra.mxu0 %v442
    %1045 = vmatprep.subr.mxu0 %v431
    %1046 = vmatpush1.msra.mxu0 %v430
    %1047 = vmatprep.subr.mxu0 %v419
    %1048 = vmatpush1.msra.mxu0 %v418
    %1049 = vmatprep.subr.mxu0 %v407
    %1050 = vmatpush1.msra.mxu0 %v406
    %1051 = vmatprep.subr.mxu0 %v779
    %1052 = vmatpush2.msra.mxu0 %v778
    %1053 = vmatprep.subr.mxu0 %v767
    %1054 = vmatpush2.msra.mxu0 %v766
    %1055 = vmatprep.subr.mxu0 %v755
    %1056 = vmatpush2.msra.mxu0 %v754
    %1057 = vmatprep.subr.mxu0 %v743
    %1058 = vmatpush2.msra.mxu0 %v742
    %1059 = vmatprep.subr.mxu0 %v731
    %1060 = vmatpush2.msra.mxu0 %v730
    %1061 = vmatprep.subr.mxu0 %v719
    %1062 = vmatpush2.msra.mxu0 %v718
    %1063 = vmatprep.subr.mxu0 %v707
    %1064 = vmatpush2.msra.mxu0 %v706
    %1065 = vmatprep.subr.mxu0 %v695
    %1066 = vmatpush2.msra.mxu0 %v694
    %1067 = vmatprep.subr.mxu0 %v683
    %1068 = vmatpush2.msra.mxu0 %v682
    %1069 = vmatprep.subr.mxu0 %v671
    %1070 = vmatpush2.msra.mxu0 %v670
    %1071 = vmatprep.subr.mxu0 %v659
    %1072 = vmatpush2.msra.mxu0 %v658
    %1073 = vmatprep.subr.mxu0 %v647
    %1074 = vmatpush2.msra.mxu0 %v646
    %1075 = vmatprep.subr.mxu0 %v635
    %1076 = vmatpush2.msra.mxu0 %v634
    %1077 = vmatprep.subr.mxu0 %v623
    %1078 = vmatpush2.msra.mxu0 %v622
    %1079 = vmatprep.subr.mxu0 %v611
    %1080 = vmatpush2.msra.mxu0 %v610
    %1081 = vmatprep.subr.mxu0 %v599
    %1082 = vmatpush2.msra.mxu0 %v598
    %1083 = vmatprep.mubr.f32.mxu0 %v15
    %1084 = vmatmul.mubr.f32.gmra.mxu0 %v14
    %v1085 = vpop.f32.mrf.mxu0
    %v1086 = vadd.f32 %v1009, %v1085
    %v1087 = vpop.f32.mrf.mxu0
    %v1088 = vadd.f32 %v1011, %v1087
    %1089 = vmatprep.mubr.f32.mxu0 %v19
    %1090 = vmatmul.mubr.f32.gmra.mxu0 %v18
    %v1091 = vpop.f32.mrf.mxu0
    %v1092 = vadd.f32 %v1015, %v1091
    %v1093 = vpop.f32.mrf.mxu0
    %v1094 = vadd.f32 %v1017, %v1093
    %1095 = vdwg.mxu0
    %1096 = vmatprep.subr.mxu0 %v205
    %1097 = vmatpush1.msra.mxu0 %v204
    %1098 = vmatprep.subr.mxu0 %v193
    %1099 = vmatpush1.msra.mxu0 %v192
    %1100 = vmatprep.subr.mxu0 %v181
    %1101 = vmatpush1.msra.mxu0 %v180
    %1102 = vmatprep.subr.mxu0 %v169
    %1103 = vmatpush1.msra.mxu0 %v168
    %1104 = vmatprep.subr.mxu0 %v157
    %1105 = vmatpush1.msra.mxu0 %v156
    %1106 = vmatprep.subr.mxu0 %v145
    %1107 = vmatpush1.msra.mxu0 %v144
    %1108 = vmatprep.subr.mxu0 %v133
    %1109 = vmatpush1.msra.mxu0 %v132
    %1110 = vmatprep.subr.mxu0 %v121
    %1111 = vmatpush1.msra.mxu0 %v120
    %1112 = vmatprep.subr.mxu0 %v109
    %1113 = vmatpush1.msra.mxu0 %v108
    %1114 = vmatprep.subr.mxu0 %v97
    %1115 = vmatpush1.msra.mxu0 %v96
    %1116 = vmatprep.subr.mxu0 %v85
    %1117 = vmatpush1.msra.mxu0 %v84
    %1118 = vmatprep.subr.mxu0 %v73
    %1119 = vmatpush1.msra.mxu0 %v72
    %1120 = vmatprep.subr.mxu0 %v61
    %1121 = vmatpush1.msra.mxu0 %v60
    %1122 = vmatprep.subr.mxu0 %v49
    %1123 = vmatpush1.msra.mxu0 %v48
    %1124 = vmatprep.subr.mxu0 %v37
    %1125 = vmatpush1.msra.mxu0 %v36
    %1126 = vmatprep.subr.mxu0 %v25
    %1127 = vmatpush1.msra.mxu0 %v24
    %1128 = vmatprep.subr.mxu0 %v397
    %1129 = vmatpush2.msra.mxu0 %v396
    %1130 = vmatprep.subr.mxu0 %v385
    %1131 = vmatpush2.msra.mxu0 %v384
    %1132 = vmatprep.subr.mxu0 %v373
    %1133 = vmatpush2.msra.mxu0 %v372
    %1134 = vmatprep.subr.mxu0 %v361
    %1135 = vmatpush2.msra.mxu0 %v360
    %1136 = vmatprep.subr.mxu0 %v349
    %1137 = vmatpush2.msra.mxu0 %v348
    %1138 = vmatprep.subr.mxu0 %v337
    %1139 = vmatpush2.msra.mxu0 %v336
    %1140 = vmatprep.subr.mxu0 %v325
    %1141 = vmatpush2.msra.mxu0 %v324
    %1142 = vmatprep.subr.mxu0 %v313
    %1143 = vmatpush2.msra.mxu0 %v312
    %1144 = vmatprep.subr.mxu0 %v301
    %1145 = vmatpush2.msra.mxu0 %v300
    %1146 = vmatprep.subr.mxu0 %v289
    %1147 = vmatpush2.msra.mxu0 %v288
    %1148 = vmatprep.subr.mxu0 %v277
    %1149 = vmatpush2.msra.mxu0 %v276
    %1150 = vmatprep.subr.mxu0 %v265
    %1151 = vmatpush2.msra.mxu0 %v264
    %1152 = vmatprep.subr.mxu0 %v253
    %1153 = vmatpush2.msra.mxu0 %v252
    %1154 = vmatprep.subr.mxu0 %v241
    %1155 = vmatpush2.msra.mxu0 %v240
    %1156 = vmatprep.subr.mxu0 %v229
    %1157 = vmatpush2.msra.mxu0 %v228
    %1158 = vmatprep.subr.mxu0 %v217
    %1159 = vmatpush2.msra.mxu0 %v216
    %1160 = vmatprep.mubr.f32.mxu0 %v13
    %1161 = vmatmul.mubr.f32.gmra.mxu0 %v12
    %v1162 = vpop.f32.mrf.mxu0
    %v1163 = vadd.f32 0.0, %v1162
    %v1164 = vpop.f32.mrf.mxu0
    %v1165 = vadd.f32 0.0, %v1164
    %1166 = vmatprep.mubr.f32.mxu0 %v17
    %1167 = vmatmul.mubr.f32.gmra.mxu0 %v16
    %v1168 = vpop.f32.mrf.mxu0
    %v1169 = vadd.f32 0.0, %v1168
    %v1170 = vpop.f32.mrf.mxu0
    %v1171 = vadd.f32 0.0, %v1170
    %1172 = vdwg.mxu0
    %1173 = vmatprep.subr.mxu0 %v589
    %1174 = vmatpush1.msra.mxu0 %v588
    %1175 = vmatprep.subr.mxu0 %v577
    %1176 = vmatpush1.msra.mxu0 %v576
    %1177 = vmatprep.subr.mxu0 %v565
    %1178 = vmatpush1.msra.mxu0 %v564
    %1179 = vmatprep.subr.mxu0 %v553
    %1180 = vmatpush1.msra.mxu0 %v552
    %1181 = vmatprep.subr.mxu0 %v541
    %1182 = vmatpush1.msra.mxu0 %v540
    %1183 = vmatprep.subr.mxu0 %v529
    %1184 = vmatpush1.msra.mxu0 %v528
    %1185 = vmatprep.subr.mxu0 %v517
    %1186 = vmatpush1.msra.mxu0 %v516
    %1187 = vmatprep.subr.mxu0 %v505
    %1188 = vmatpush1.msra.mxu0 %v504
    %1189 = vmatprep.subr.mxu0 %v493
    %1190 = vmatpush1.msra.mxu0 %v492
    %1191 = vmatprep.subr.mxu0 %v481
    %1192 = vmatpush1.msra.mxu0 %v480
    %1193 = vmatprep.subr.mxu0 %v469
    %1194 = vmatpush1.msra.mxu0 %v468
    %1195 = vmatprep.subr.mxu0 %v457
    %1196 = vmatpush1.msra.mxu0 %v456
    %1197 = vmatprep.subr.mxu0 %v445
    %1198 = vmatpush1.msra.mxu0 %v444
    %1199 = vmatprep.subr.mxu0 %v433
    %1200 = vmatpush1.msra.mxu0 %v432
    %1201 = vmatprep.subr.mxu0 %v421
    %1202 = vmatpush1.msra.mxu0 %v420
    %1203 = vmatprep.subr.mxu0 %v409
    %1204 = vmatpush1.msra.mxu0 %v408
    %1205 = vmatprep.subr.mxu0 %v781
    %1206 = vmatpush2.msra.mxu0 %v780
    %1207 = vmatprep.subr.mxu0 %v769
    %1208 = vmatpush2.msra.mxu0 %v768
    %1209 = vmatprep.subr.mxu0 %v757
    %1210 = vmatpush2.msra.mxu0 %v756
    %1211 = vmatprep.subr.mxu0 %v745
    %1212 = vmatpush2.msra.mxu0 %v744
    %1213 = vmatprep.subr.mxu0 %v733
    %1214 = vmatpush2.msra.mxu0 %v732
    %1215 = vmatprep.subr.mxu0 %v721
    %1216 = vmatpush2.msra.mxu0 %v720
    %1217 = vmatprep.subr.mxu0 %v709
    %1218 = vmatpush2.msra.mxu0 %v708
    %1219 = vmatprep.subr.mxu0 %v697
    %1220 = vmatpush2.msra.mxu0 %v696
    %1221 = vmatprep.subr.mxu0 %v685
    %1222 = vmatpush2.msra.mxu0 %v684
    %1223 = vmatprep.subr.mxu0 %v673
    %1224 = vmatpush2.msra.mxu0 %v672
    %1225 = vmatprep.subr.mxu0 %v661
    %1226 = vmatpush2.msra.mxu0 %v660
    %1227 = vmatprep.subr.mxu0 %v649
    %1228 = vmatpush2.msra.mxu0 %v648
    %1229 = vmatprep.subr.mxu0 %v637
    %1230 = vmatpush2.msra.mxu0 %v636
    %1231 = vmatprep.subr.mxu0 %v625
    %1232 = vmatpush2.msra.mxu0 %v624
    %1233 = vmatprep.subr.mxu0 %v613
    %1234 = vmatpush2.msra.mxu0 %v612
    %1235 = vmatprep.subr.mxu0 %v601
    %1236 = vmatpush2.msra.mxu0 %v600
    %1237 = vmatprep.mubr.f32.mxu0 %v15
    %1238 = vmatmul.mubr.f32.gmra.mxu0 %v14
    %v1239 = vpop.f32.mrf.mxu0
    %v1240 = vadd.f32 %v1163, %v1239
    %v1241 = vpop.f32.mrf.mxu0
    %v1242 = vadd.f32 %v1165, %v1241
    %1243 = vmatprep.mubr.f32.mxu0 %v19
    %1244 = vmatmul.mubr.f32.gmra.mxu0 %v18
    %v1245 = vpop.f32.mrf.mxu0
    %v1246 = vadd.f32 %v1169, %v1245
    %v1247 = vpop.f32.mrf.mxu0
    %v1248 = vadd.f32 %v1171, %v1247
    %1249 = vdwg.mxu0
    %1250 = vmatprep.subr.mxu0 %v207
    %1251 = vmatpush1.msra.mxu0 %v206
    %1252 = vmatprep.subr.mxu0 %v195
    %1253 = vmatpush1.msra.mxu0 %v194
    %1254 = vmatprep.subr.mxu0 %v183
    %1255 = vmatpush1.msra.mxu0 %v182
    %1256 = vmatprep.subr.mxu0 %v171
    %1257 = vmatpush1.msra.mxu0 %v170
    %1258 = vmatprep.subr.mxu0 %v159
    %1259 = vmatpush1.msra.mxu0 %v158
    %1260 = vmatprep.subr.mxu0 %v147
    %1261 = vmatpush1.msra.mxu0 %v146
    %1262 = vmatprep.subr.mxu0 %v135
    %1263 = vmatpush1.msra.mxu0 %v134
    %1264 = vmatprep.subr.mxu0 %v123
    %1265 = vmatpush1.msra.mxu0 %v122
    %1266 = vmatprep.subr.mxu0 %v111
    %1267 = vmatpush1.msra.mxu0 %v110
    %1268 = vmatprep.subr.mxu0 %v99
    %1269 = vmatpush1.msra.mxu0 %v98
    %1270 = vmatprep.subr.mxu0 %v87
    %1271 = vmatpush1.msra.mxu0 %v86
    %1272 = vmatprep.subr.mxu0 %v75
    %1273 = vmatpush1.msra.mxu0 %v74
    %1274 = vmatprep.subr.mxu0 %v63
    %1275 = vmatpush1.msra.mxu0 %v62
    %1276 = vmatprep.subr.mxu0 %v51
    %1277 = vmatpush1.msra.mxu0 %v50
    %1278 = vmatprep.subr.mxu0 %v39
    %1279 = vmatpush1.msra.mxu0 %v38
    %1280 = vmatprep.subr.mxu0 %v27
    %1281 = vmatpush1.msra.mxu0 %v26
    %1282 = vmatprep.subr.mxu0 %v399
    %1283 = vmatpush2.msra.mxu0 %v398
    %1284 = vmatprep.subr.mxu0 %v387
    %1285 = vmatpush2.msra.mxu0 %v386
    %1286 = vmatprep.subr.mxu0 %v375
    %1287 = vmatpush2.msra.mxu0 %v374
    %1288 = vmatprep.subr.mxu0 %v363
    %1289 = vmatpush2.msra.mxu0 %v362
    %1290 = vmatprep.subr.mxu0 %v351
    %1291 = vmatpush2.msra.mxu0 %v350
    %1292 = vmatprep.subr.mxu0 %v339
    %1293 = vmatpush2.msra.mxu0 %v338
    %1294 = vmatprep.subr.mxu0 %v327
    %1295 = vmatpush2.msra.mxu0 %v326
    %1296 = vmatprep.subr.mxu0 %v315
    %1297 = vmatpush2.msra.mxu0 %v314
    %1298 = vmatprep.subr.mxu0 %v303
    %1299 = vmatpush2.msra.mxu0 %v302
    %1300 = vmatprep.subr.mxu0 %v291
    %1301 = vmatpush2.msra.mxu0 %v290
    %1302 = vmatprep.subr.mxu0 %v279
    %1303 = vmatpush2.msra.mxu0 %v278
    %1304 = vmatprep.subr.mxu0 %v267
    %1305 = vmatpush2.msra.mxu0 %v266
    %1306 = vmatprep.subr.mxu0 %v255
    %1307 = vmatpush2.msra.mxu0 %v254
    %1308 = vmatprep.subr.mxu0 %v243
    %1309 = vmatpush2.msra.mxu0 %v242
    %1310 = vmatprep.subr.mxu0 %v231
    %1311 = vmatpush2.msra.mxu0 %v230
    %1312 = vmatprep.subr.mxu0 %v219
    %1313 = vmatpush2.msra.mxu0 %v218
    %1314 = vmatprep.mubr.f32.mxu0 %v13
    %1315 = vmatmul.mubr.f32.gmra.mxu0 %v12
    %v1316 = vpop.f32.mrf.mxu0
    %v1317 = vadd.f32 0.0, %v1316
    %v1318 = vpop.f32.mrf.mxu0
    %v1319 = vadd.f32 0.0, %v1318
    %1320 = vmatprep.mubr.f32.mxu0 %v17
    %1321 = vmatmul.mubr.f32.gmra.mxu0 %v16
    %v1322 = vpop.f32.mrf.mxu0
    %v1323 = vadd.f32 0.0, %v1322
    %v1324 = vpop.f32.mrf.mxu0
    %v1325 = vadd.f32 0.0, %v1324
    %1326 = vdwg.mxu0
    %1327 = vmatprep.subr.mxu0 %v591
    %1328 = vmatpush1.msra.mxu0 %v590
    %1329 = vmatprep.subr.mxu0 %v579
    %1330 = vmatpush1.msra.mxu0 %v578
    %1331 = vmatprep.subr.mxu0 %v567
    %1332 = vmatpush1.msra.mxu0 %v566
    %1333 = vmatprep.subr.mxu0 %v555
    %1334 = vmatpush1.msra.mxu0 %v554
    %1335 = vmatprep.subr.mxu0 %v543
    %1336 = vmatpush1.msra.mxu0 %v542
    %1337 = vmatprep.subr.mxu0 %v531
    %1338 = vmatpush1.msra.mxu0 %v530
    %1339 = vmatprep.subr.mxu0 %v519
    %1340 = vmatpush1.msra.mxu0 %v518
    %1341 = vmatprep.subr.mxu0 %v507
    %1342 = vmatpush1.msra.mxu0 %v506
    %1343 = vmatprep.subr.mxu0 %v495
    %1344 = vmatpush1.msra.mxu0 %v494
    %1345 = vmatprep.subr.mxu0 %v483
    %1346 = vmatpush1.msra.mxu0 %v482
    %1347 = vmatprep.subr.mxu0 %v471
    %1348 = vmatpush1.msra.mxu0 %v470
    %1349 = vmatprep.subr.mxu0 %v459
    %1350 = vmatpush1.msra.mxu0 %v458
    %1351 = vmatprep.subr.mxu0 %v447
    %1352 = vmatpush1.msra.mxu0 %v446
    %1353 = vmatprep.subr.mxu0 %v435
    %1354 = vmatpush1.msra.mxu0 %v434
    %1355 = vmatprep.subr.mxu0 %v423
    %1356 = vmatpush1.msra.mxu0 %v422
    %1357 = vmatprep.subr.mxu0 %v411
    %1358 = vmatpush1.msra.mxu0 %v410
    %1359 = vmatprep.subr.mxu0 %v783
    %1360 = vmatpush2.msra.mxu0 %v782
    %1361 = vmatprep.subr.mxu0 %v771
    %1362 = vmatpush2.msra.mxu0 %v770
    %1363 = vmatprep.subr.mxu0 %v759
    %1364 = vmatpush2.msra.mxu0 %v758
    %1365 = vmatprep.subr.mxu0 %v747
    %1366 = vmatpush2.msra.mxu0 %v746
    %1367 = vmatprep.subr.mxu0 %v735
    %1368 = vmatpush2.msra.mxu0 %v734
    %1369 = vmatprep.subr.mxu0 %v723
    %1370 = vmatpush2.msra.mxu0 %v722
    %1371 = vmatprep.subr.mxu0 %v711
    %1372 = vmatpush2.msra.mxu0 %v710
    %1373 = vmatprep.subr.mxu0 %v699
    %1374 = vmatpush2.msra.mxu0 %v698
    %1375 = vmatprep.subr.mxu0 %v687
    %1376 = vmatpush2.msra.mxu0 %v686
    %1377 = vmatprep.subr.mxu0 %v675
    %1378 = vmatpush2.msra.mxu0 %v674
    %1379 = vmatprep.subr.mxu0 %v663
    %1380 = vmatpush2.msra.mxu0 %v662
    %1381 = vmatprep.subr.mxu0 %v651
    %1382 = vmatpush2.msra.mxu0 %v650
    %1383 = vmatprep.subr.mxu0 %v639
    %1384 = vmatpush2.msra.mxu0 %v638
    %1385 = vmatprep.subr.mxu0 %v627
    %1386 = vmatpush2.msra.mxu0 %v626
    %1387 = vmatprep.subr.mxu0 %v615
    %1388 = vmatpush2.msra.mxu0 %v614
    %1389 = vmatprep.subr.mxu0 %v603
    %1390 = vmatpush2.msra.mxu0 %v602
    %1391 = vmatprep.mubr.f32.mxu0 %v15
    %1392 = vmatmul.mubr.f32.gmra.mxu0 %v14
    %v1393 = vpop.f32.mrf.mxu0
    %v1394 = vadd.f32 %v1317, %v1393
    %v1395 = vpop.f32.mrf.mxu0
    %v1396 = vadd.f32 %v1319, %v1395
    %1397 = vmatprep.mubr.f32.mxu0 %v19
    %1398 = vmatmul.mubr.f32.gmra.mxu0 %v18
    %v1399 = vpop.f32.mrf.mxu0
    %v1400 = vadd.f32 %v1323, %v1399
    %v1401 = vpop.f32.mrf.mxu0
    %v1402 = vadd.f32 %v1325, %v1401
    %1403 = vdwg.mxu0
    %1404 = vmatprep.subr.mxu0 %v209
    %1405 = vmatpush1.msra.mxu0 %v208
    %1406 = vmatprep.subr.mxu0 %v197
    %1407 = vmatpush1.msra.mxu0 %v196
    %1408 = vmatprep.subr.mxu0 %v185
    %1409 = vmatpush1.msra.mxu0 %v184
    %1410 = vmatprep.subr.mxu0 %v173
    %1411 = vmatpush1.msra.mxu0 %v172
    %1412 = vmatprep.subr.mxu0 %v161
    %1413 = vmatpush1.msra.mxu0 %v160
    %1414 = vmatprep.subr.mxu0 %v149
    %1415 = vmatpush1.msra.mxu0 %v148
    %1416 = vmatprep.subr.mxu0 %v137
    %1417 = vmatpush1.msra.mxu0 %v136
    %1418 = vmatprep.subr.mxu0 %v125
    %1419 = vmatpush1.msra.mxu0 %v124
    %1420 = vmatprep.subr.mxu0 %v113
    %1421 = vmatpush1.msra.mxu0 %v112
    %1422 = vmatprep.subr.mxu0 %v101
    %1423 = vmatpush1.msra.mxu0 %v100
    %1424 = vmatprep.subr.mxu0 %v89
    %1425 = vmatpush1.msra.mxu0 %v88
    %1426 = vmatprep.subr.mxu0 %v77
    %1427 = vmatpush1.msra.mxu0 %v76
    %1428 = vmatprep.subr.mxu0 %v65
    %1429 = vmatpush1.msra.mxu0 %v64
    %1430 = vmatprep.subr.mxu0 %v53
    %1431 = vmatpush1.msra.mxu0 %v52
    %1432 = vmatprep.subr.mxu0 %v41
    %1433 = vmatpush1.msra.mxu0 %v40
    %1434 = vmatprep.subr.mxu0 %v29
    %1435 = vmatpush1.msra.mxu0 %v28
    %1436 = vmatprep.subr.mxu0 %v401
    %1437 = vmatpush2.msra.mxu0 %v400
    %1438 = vmatprep.subr.mxu0 %v389
    %1439 = vmatpush2.msra.mxu0 %v388
    %1440 = vmatprep.subr.mxu0 %v377
    %1441 = vmatpush2.msra.mxu0 %v376
    %1442 = vmatprep.subr.mxu0 %v365
    %1443 = vmatpush2.msra.mxu0 %v364
    %1444 = vmatprep.subr.mxu0 %v353
    %1445 = vmatpush2.msra.mxu0 %v352
    %1446 = vmatprep.subr.mxu0 %v341
    %1447 = vmatpush2.msra.mxu0 %v340
    %1448 = vmatprep.subr.mxu0 %v329
    %1449 = vmatpush2.msra.mxu0 %v328
    %1450 = vmatprep.subr.mxu0 %v317
    %1451 = vmatpush2.msra.mxu0 %v316
    %1452 = vmatprep.subr.mxu0 %v305
    %1453 = vmatpush2.msra.mxu0 %v304
    %1454 = vmatprep.subr.mxu0 %v293
    %1455 = vmatpush2.msra.mxu0 %v292
    %1456 = vmatprep.subr.mxu0 %v281
    %1457 = vmatpush2.msra.mxu0 %v280
    %1458 = vmatprep.subr.mxu0 %v269
    %1459 = vmatpush2.msra.mxu0 %v268
    %1460 = vmatprep.subr.mxu0 %v257
    %1461 = vmatpush2.msra.mxu0 %v256
    %1462 = vmatprep.subr.mxu0 %v245
    %1463 = vmatpush2.msra.mxu0 %v244
    %1464 = vmatprep.subr.mxu0 %v233
    %1465 = vmatpush2.msra.mxu0 %v232
    %1466 = vmatprep.subr.mxu0 %v221
    %1467 = vmatpush2.msra.mxu0 %v220
    %1468 = vmatprep.mubr.f32.mxu0 %v13
    %1469 = vmatmul.mubr.f32.gmra.mxu0 %v12
    %v1470 = vpop.f32.mrf.mxu0
    %v1471 = vadd.f32 0.0, %v1470
    %v1472 = vpop.f32.mrf.mxu0
    %v1473 = vadd.f32 0.0, %v1472
    %1474 = vmatprep.mubr.f32.mxu0 %v17
    %1475 = vmatmul.mubr.f32.gmra.mxu0 %v16
    %v1476 = vpop.f32.mrf.mxu0
    %v1477 = vadd.f32 0.0, %v1476
    %v1478 = vpop.f32.mrf.mxu0
    %v1479 = vadd.f32 0.0, %v1478
    %1480 = vdwg.mxu0
    %1481 = vmatprep.subr.mxu0 %v593
    %1482 = vmatpush1.msra.mxu0 %v592
    %1483 = vmatprep.subr.mxu0 %v581
    %1484 = vmatpush1.msra.mxu0 %v580
    %1485 = vmatprep.subr.mxu0 %v569
    %1486 = vmatpush1.msra.mxu0 %v568
    %1487 = vmatprep.subr.mxu0 %v557
    %1488 = vmatpush1.msra.mxu0 %v556
    %1489 = vmatprep.subr.mxu0 %v545
    %1490 = vmatpush1.msra.mxu0 %v544
    %1491 = vmatprep.subr.mxu0 %v533
    %1492 = vmatpush1.msra.mxu0 %v532
    %1493 = vmatprep.subr.mxu0 %v521
    %1494 = vmatpush1.msra.mxu0 %v520
    %1495 = vmatprep.subr.mxu0 %v509
    %1496 = vmatpush1.msra.mxu0 %v508
    %1497 = vmatprep.subr.mxu0 %v497
    %1498 = vmatpush1.msra.mxu0 %v496
    %1499 = vmatprep.subr.mxu0 %v485
    %1500 = vmatpush1.msra.mxu0 %v484
    %1501 = vmatprep.subr.mxu0 %v473
    %1502 = vmatpush1.msra.mxu0 %v472
    %1503 = vmatprep.subr.mxu0 %v461
    %1504 = vmatpush1.msra.mxu0 %v460
    %1505 = vmatprep.subr.mxu0 %v449
    %1506 = vmatpush1.msra.mxu0 %v448
    %1507 = vmatprep.subr.mxu0 %v437
    %1508 = vmatpush1.msra.mxu0 %v436
    %1509 = vmatprep.subr.mxu0 %v425
    %1510 = vmatpush1.msra.mxu0 %v424
    %1511 = vmatprep.subr.mxu0 %v413
    %1512 = vmatpush1.msra.mxu0 %v412
    %1513 = vmatprep.subr.mxu0 %v785
    %1514 = vmatpush2.msra.mxu0 %v784
    %1515 = vmatprep.subr.mxu0 %v773
    %1516 = vmatpush2.msra.mxu0 %v772
    %1517 = vmatprep.subr.mxu0 %v761
    %1518 = vmatpush2.msra.mxu0 %v760
    %1519 = vmatprep.subr.mxu0 %v749
    %1520 = vmatpush2.msra.mxu0 %v748
    %1521 = vmatprep.subr.mxu0 %v737
    %1522 = vmatpush2.msra.mxu0 %v736
    %1523 = vmatprep.subr.mxu0 %v725
    %1524 = vmatpush2.msra.mxu0 %v724
    %1525 = vmatprep.subr.mxu0 %v713
    %1526 = vmatpush2.msra.mxu0 %v712
    %1527 = vmatprep.subr.mxu0 %v701
    %1528 = vmatpush2.msra.mxu0 %v700
    %1529 = vmatprep.subr.mxu0 %v689
    %1530 = vmatpush2.msra.mxu0 %v688
    %1531 = vmatprep.subr.mxu0 %v677
    %1532 = vmatpush2.msra.mxu0 %v676
    %1533 = vmatprep.subr.mxu0 %v665
    %1534 = vmatpush2.msra.mxu0 %v664
    %1535 = vmatprep.subr.mxu0 %v653
    %1536 = vmatpush2.msra.mxu0 %v652
    %1537 = vmatprep.subr.mxu0 %v641
    %1538 = vmatpush2.msra.mxu0 %v640
    %1539 = vmatprep.subr.mxu0 %v629
    %1540 = vmatpush2.msra.mxu0 %v628
    %1541 = vmatprep.subr.mxu0 %v617
    %1542 = vmatpush2.msra.mxu0 %v616
    %1543 = vmatprep.subr.mxu0 %v605
    %1544 = vmatpush2.msra.mxu0 %v604
    %1545 = vmatprep.mubr.f32.mxu0 %v15
    %1546 = vmatmul.mubr.f32.gmra.mxu0 %v14
    %v1547 = vpop.f32.mrf.mxu0
    %v1548 = vadd.f32 %v1471, %v1547
    %v1549 = vpop.f32.mrf.mxu0
    %v1550 = vadd.f32 %v1473, %v1549
    %1551 = vmatprep.mubr.f32.mxu0 %v19
    %1552 = vmatmul.mubr.f32.gmra.mxu0 %v18
    %v1553 = vpop.f32.mrf.mxu0
    %v1554 = vadd.f32 %v1477, %v1553
    %v1555 = vpop.f32.mrf.mxu0
    %v1556 = vadd.f32 %v1479, %v1555
    %1557 = vdwg.mxu0
    %1558 = vmatprep.subr.mxu0 %v211
    %1559 = vmatpush1.msra.mxu0 %v210
    %1560 = vmatprep.subr.mxu0 %v199
    %1561 = vmatpush1.msra.mxu0 %v198
    %1562 = vmatprep.subr.mxu0 %v187
    %1563 = vmatpush1.msra.mxu0 %v186
    %1564 = vmatprep.subr.mxu0 %v175
    %1565 = vmatpush1.msra.mxu0 %v174
    %1566 = vmatprep.subr.mxu0 %v163
    %1567 = vmatpush1.msra.mxu0 %v162
    %1568 = vmatprep.subr.mxu0 %v151
    %1569 = vmatpush1.msra.mxu0 %v150
    %1570 = vmatprep.subr.mxu0 %v139
    %1571 = vmatpush1.msra.mxu0 %v138
    %1572 = vmatprep.subr.mxu0 %v127
    %1573 = vmatpush1.msra.mxu0 %v126
    %1574 = vmatprep.subr.mxu0 %v115
    %1575 = vmatpush1.msra.mxu0 %v114
    %1576 = vmatprep.subr.mxu0 %v103
    %1577 = vmatpush1.msra.mxu0 %v102
    %1578 = vmatprep.subr.mxu0 %v91
    %1579 = vmatpush1.msra.mxu0 %v90
    %1580 = vmatprep.subr.mxu0 %v79
    %1581 = vmatpush1.msra.mxu0 %v78
    %1582 = vmatprep.subr.mxu0 %v67
    %1583 = vmatpush1.msra.mxu0 %v66
    %1584 = vmatprep.subr.mxu0 %v55
    %1585 = vmatpush1.msra.mxu0 %v54
    %1586 = vmatprep.subr.mxu0 %v43
    %1587 = vmatpush1.msra.mxu0 %v42
    %1588 = vmatprep.subr.mxu0 %v31
    %1589 = vmatpush1.msra.mxu0 %v30
    %1590 = vmatprep.subr.mxu0 %v403
    %1591 = vmatpush2.msra.mxu0 %v402
    %1592 = vmatprep.subr.mxu0 %v391
    %1593 = vmatpush2.msra.mxu0 %v390
    %1594 = vmatprep.subr.mxu0 %v379
    %1595 = vmatpush2.msra.mxu0 %v378
    %1596 = vmatprep.subr.mxu0 %v367
    %1597 = vmatpush2.msra.mxu0 %v366
    %1598 = vmatprep.subr.mxu0 %v355
    %1599 = vmatpush2.msra.mxu0 %v354
    %1600 = vmatprep.subr.mxu0 %v343
    %1601 = vmatpush2.msra.mxu0 %v342
    %1602 = vmatprep.subr.mxu0 %v331
    %1603 = vmatpush2.msra.mxu0 %v330
    %1604 = vmatprep.subr.mxu0 %v319
    %1605 = vmatpush2.msra.mxu0 %v318
    %1606 = vmatprep.subr.mxu0 %v307
    %1607 = vmatpush2.msra.mxu0 %v306
    %1608 = vmatprep.subr.mxu0 %v295
    %1609 = vmatpush2.msra.mxu0 %v294
    %1610 = vmatprep.subr.mxu0 %v283
    %1611 = vmatpush2.msra.mxu0 %v282
    %1612 = vmatprep.subr.mxu0 %v271
    %1613 = vmatpush2.msra.mxu0 %v270
    %1614 = vmatprep.subr.mxu0 %v259
    %1615 = vmatpush2.msra.mxu0 %v258
    %1616 = vmatprep.subr.mxu0 %v247
    %1617 = vmatpush2.msra.mxu0 %v246
    %1618 = vmatprep.subr.mxu0 %v235
    %1619 = vmatpush2.msra.mxu0 %v234
    %1620 = vmatprep.subr.mxu0 %v223
    %1621 = vmatpush2.msra.mxu0 %v222
    %1622 = vmatprep.mubr.f32.mxu0 %v13
    %1623 = vmatmul.mubr.f32.gmra.mxu0 %v12
    %v1624 = vpop.f32.mrf.mxu0
    %v1625 = vadd.f32 0.0, %v1624
    %v1626 = vpop.f32.mrf.mxu0
    %v1627 = vadd.f32 0.0, %v1626
    %1628 = vmatprep.mubr.f32.mxu0 %v17
    %1629 = vmatmul.mubr.f32.gmra.mxu0 %v16
    %v1630 = vpop.f32.mrf.mxu0
    %v1631 = vadd.f32 0.0, %v1630
    %v1632 = vpop.f32.mrf.mxu0
    %v1633 = vadd.f32 0.0, %v1632
    %1634 = vdwg.mxu0
    %1635 = vmatprep.subr.mxu0 %v595
    %1636 = vmatpush1.msra.mxu0 %v594
    %1637 = vmatprep.subr.mxu0 %v583
    %1638 = vmatpush1.msra.mxu0 %v582
    %1639 = vmatprep.subr.mxu0 %v571
    %1640 = vmatpush1.msra.mxu0 %v570
    %1641 = vmatprep.subr.mxu0 %v559
    %1642 = vmatpush1.msra.mxu0 %v558
    %1643 = vmatprep.subr.mxu0 %v547
    %1644 = vmatpush1.msra.mxu0 %v546
    %1645 = vmatprep.subr.mxu0 %v535
    %1646 = vmatpush1.msra.mxu0 %v534
    %1647 = vmatprep.subr.mxu0 %v523
    %1648 = vmatpush1.msra.mxu0 %v522
    %1649 = vmatprep.subr.mxu0 %v511
    %1650 = vmatpush1.msra.mxu0 %v510
    %1651 = vmatprep.subr.mxu0 %v499
    %1652 = vmatpush1.msra.mxu0 %v498
    %1653 = vmatprep.subr.mxu0 %v487
    %1654 = vmatpush1.msra.mxu0 %v486
    %1655 = vmatprep.subr.mxu0 %v475
    %1656 = vmatpush1.msra.mxu0 %v474
    %1657 = vmatprep.subr.mxu0 %v463
    %1658 = vmatpush1.msra.mxu0 %v462
    %1659 = vmatprep.subr.mxu0 %v451
    %1660 = vmatpush1.msra.mxu0 %v450
    %1661 = vmatprep.subr.mxu0 %v439
    %1662 = vmatpush1.msra.mxu0 %v438
    %1663 = vmatprep.subr.mxu0 %v427
    %1664 = vmatpush1.msra.mxu0 %v426
    %1665 = vmatprep.subr.mxu0 %v415
    %1666 = vmatpush1.msra.mxu0 %v414
    %1667 = vmatprep.subr.mxu0 %v787
    %1668 = vmatpush2.msra.mxu0 %v786
    %1669 = vmatprep.subr.mxu0 %v775
    %1670 = vmatpush2.msra.mxu0 %v774
    %1671 = vmatprep.subr.mxu0 %v763
    %1672 = vmatpush2.msra.mxu0 %v762
    %1673 = vmatprep.subr.mxu0 %v751
    %1674 = vmatpush2.msra.mxu0 %v750
    %1675 = vmatprep.subr.mxu0 %v739
    %1676 = vmatpush2.msra.mxu0 %v738
    %1677 = vmatprep.subr.mxu0 %v727
    %1678 = vmatpush2.msra.mxu0 %v726
    %1679 = vmatprep.subr.mxu0 %v715
    %1680 = vmatpush2.msra.mxu0 %v714
    %1681 = vmatprep.subr.mxu0 %v703
    %1682 = vmatpush2.msra.mxu0 %v702
    %1683 = vmatprep.subr.mxu0 %v691
    %1684 = vmatpush2.msra.mxu0 %v690
    %1685 = vmatprep.subr.mxu0 %v679
    %1686 = vmatpush2.msra.mxu0 %v678
    %1687 = vmatprep.subr.mxu0 %v667
    %1688 = vmatpush2.msra.mxu0 %v666
    %1689 = vmatprep.subr.mxu0 %v655
    %1690 = vmatpush2.msra.mxu0 %v654
    %1691 = vmatprep.subr.mxu0 %v643
    %1692 = vmatpush2.msra.mxu0 %v642
    %1693 = vmatprep.subr.mxu0 %v631
    %1694 = vmatpush2.msra.mxu0 %v630
    %1695 = vmatprep.subr.mxu0 %v619
    %1696 = vmatpush2.msra.mxu0 %v618
    %1697 = vmatprep.subr.mxu0 %v607
    %1698 = vmatpush2.msra.mxu0 %v606
    %1699 = vmatprep.mubr.f32.mxu0 %v15
    %1700 = vmatmul.mubr.f32.gmra.mxu0 %v14
    %v1701 = vpop.f32.mrf.mxu0
    %v1702 = vadd.f32 %v1625, %v1701
    %v1703 = vpop.f32.mrf.mxu0
    %v1704 = vadd.f32 %v1627, %v1703
    %1705 = vmatprep.mubr.f32.mxu0 %v19
    %1706 = vmatmul.mubr.f32.gmra.mxu0 %v18
    %v1707 = vpop.f32.mrf.mxu0
    %v1708 = vadd.f32 %v1631, %v1707
    %v1709 = vpop.f32.mrf.mxu0
    %v1710 = vadd.f32 %v1633, %v1709
    %1711 = vdwg.mxu0
    %1712 = vmatprep.subr.mxu0 0.0
    %1713 = vmatpush1.xpose.msra.mxu0 0.0
    %1714 = vmatprep.subr.mxu0 0.0
    %1715 = vmatpush1.xpose.msra.mxu0 0.0
    %1716 = vmatprep.subr.mxu0 0.0
    %1717 = vmatpush1.xpose.msra.mxu0 0.0
    %1718 = vmatprep.subr.mxu0 0.0
    %1719 = vmatpush1.xpose.msra.mxu0 0.0
    %1720 = vmatprep.subr.mxu0 0.0
    %1721 = vmatpush1.xpose.msra.mxu0 0.0
    %1722 = vmatprep.subr.mxu0 0.0
    %1723 = vmatpush1.xpose.msra.mxu0 0.0
    %1724 = vmatprep.subr.mxu0 0.0
    %1725 = vmatpush1.xpose.msra.mxu0 0.0
    %1726 = vmatprep.subr.mxu0 0.0
    %1727 = vmatpush1.xpose.msra.mxu0 0.0
    %1728 = vmatprep.subr.mxu0 0.0
    %1729 = vmatpush1.xpose.msra.mxu0 0.0
    %1730 = vmatprep.subr.mxu0 0.0
    %1731 = vmatpush1.xpose.msra.mxu0 0.0
    %1732 = vmatprep.subr.mxu0 0.0
    %1733 = vmatpush1.xpose.msra.mxu0 0.0
    %1734 = vmatprep.subr.mxu0 0.0
    %1735 = vmatpush1.xpose.msra.mxu0 0.0
    %1736 = vmatprep.subr.mxu0 0.0
    %1737 = vmatpush1.xpose.msra.mxu0 0.0
    %1738 = vmatprep.subr.mxu0 0.0
    %1739 = vmatpush1.xpose.msra.mxu0 0.0
    %1740 = vmatprep.subr.mxu0 0.0
    %1741 = vmatpush1.xpose.msra.mxu0 0.0
    %1742 = vmatprep.subr.mxu0 %v1242
    %1743 = vmatpush1.xpose.msra.mxu0 %v1240
    %1744 = vmatprep.subr.mxu0 0.0
    %1745 = vmatpush2.xpose.msra.mxu0 0.0
    %1746 = vmatprep.subr.mxu0 0.0
    %1747 = vmatpush2.xpose.msra.mxu0 0.0
    %1748 = vmatprep.subr.mxu0 0.0
    %1749 = vmatpush2.xpose.msra.mxu0 0.0
    %1750 = vmatprep.subr.mxu0 0.0
    %1751 = vmatpush2.xpose.msra.mxu0 0.0
    %1752 = vmatprep.subr.mxu0 0.0
    %1753 = vmatpush2.xpose.msra.mxu0 0.0
    %1754 = vmatprep.subr.mxu0 0.0
    %1755 = vmatpush2.xpose.msra.mxu0 0.0
    %1756 = vmatprep.subr.mxu0 0.0
    %1757 = vmatpush2.xpose.msra.mxu0 0.0
    %1758 = vmatprep.subr.mxu0 0.0
    %1759 = vmatpush2.xpose.msra.mxu0 0.0
    %1760 = vmatprep.subr.mxu0 0.0
    %1761 = vmatpush2.xpose.msra.mxu0 0.0
    %1762 = vmatprep.subr.mxu0 0.0
    %1763 = vmatpush2.xpose.msra.mxu0 0.0
    %1764 = vmatprep.subr.mxu0 0.0
    %1765 = vmatpush2.xpose.msra.mxu0 0.0
    %1766 = vmatprep.subr.mxu0 0.0
    %1767 = vmatpush2.xpose.msra.mxu0 0.0
    %1768 = vmatprep.subr.mxu0 0.0
    %1769 = vmatpush2.xpose.msra.mxu0 0.0
    %1770 = vmatprep.subr.mxu0 0.0
    %1771 = vmatpush2.xpose.msra.mxu0 0.0
    %1772 = vmatprep.subr.mxu0 0.0
    %1773 = vmatpush2.xpose.msra.mxu0 0.0
    %1774 = vmatprep.subr.mxu0 0.0
    %1775 = vmatpush2.xpose.msra.mxu0 0.0
    %1776 = vmatprep.mubr.f32.mxu0 %v934
    %1777 = vmatmul.mubr.f32.gmra.mxu0 %v932
    %v1778 = vpop.f32.mrf.mxu0
    %v1779 = vadd.f32 0.0, %v1778
    %v1780 = vpop.f32.mrf.mxu0
    %1781 = vdwg.mxu0
    %1782 = vmatprep.subr.mxu0 0.0
    %1783 = vmatpush1.xpose.msra.mxu0 0.0
    %1784 = vmatprep.subr.mxu0 0.0
    %1785 = vmatpush1.xpose.msra.mxu0 0.0
    %1786 = vmatprep.subr.mxu0 0.0
    %1787 = vmatpush1.xpose.msra.mxu0 0.0
    %1788 = vmatprep.subr.mxu0 0.0
    %1789 = vmatpush1.xpose.msra.mxu0 0.0
    %1790 = vmatprep.subr.mxu0 0.0
    %1791 = vmatpush1.xpose.msra.mxu0 0.0
    %1792 = vmatprep.subr.mxu0 0.0
    %1793 = vmatpush1.xpose.msra.mxu0 0.0
    %1794 = vmatprep.subr.mxu0 0.0
    %1795 = vmatpush1.xpose.msra.mxu0 0.0
    %1796 = vmatprep.subr.mxu0 0.0
    %1797 = vmatpush1.xpose.msra.mxu0 0.0
    %1798 = vmatprep.subr.mxu0 0.0
    %1799 = vmatpush1.xpose.msra.mxu0 0.0
    %1800 = vmatprep.subr.mxu0 0.0
    %1801 = vmatpush1.xpose.msra.mxu0 0.0
    %1802 = vmatprep.subr.mxu0 0.0
    %1803 = vmatpush1.xpose.msra.mxu0 0.0
    %1804 = vmatprep.subr.mxu0 0.0
    %1805 = vmatpush1.xpose.msra.mxu0 0.0
    %1806 = vmatprep.subr.mxu0 0.0
    %1807 = vmatpush1.xpose.msra.mxu0 0.0
    %1808 = vmatprep.subr.mxu0 0.0
    %1809 = vmatpush1.xpose.msra.mxu0 0.0
    %1810 = vmatprep.subr.mxu0 0.0
    %1811 = vmatpush1.xpose.msra.mxu0 0.0
    %1812 = vmatprep.subr.mxu0 %v1396
    %1813 = vmatpush1.xpose.msra.mxu0 %v1394
    %1814 = vmatprep.subr.mxu0 0.0
    %1815 = vmatpush2.xpose.msra.mxu0 0.0
    %1816 = vmatprep.subr.mxu0 0.0
    %1817 = vmatpush2.xpose.msra.mxu0 0.0
    %1818 = vmatprep.subr.mxu0 0.0
    %1819 = vmatpush2.xpose.msra.mxu0 0.0
    %1820 = vmatprep.subr.mxu0 0.0
    %1821 = vmatpush2.xpose.msra.mxu0 0.0
    %1822 = vmatprep.subr.mxu0 0.0
    %1823 = vmatpush2.xpose.msra.mxu0 0.0
    %1824 = vmatprep.subr.mxu0 0.0
    %1825 = vmatpush2.xpose.msra.mxu0 0.0
    %1826 = vmatprep.subr.mxu0 0.0
    %1827 = vmatpush2.xpose.msra.mxu0 0.0
    %1828 = vmatprep.subr.mxu0 0.0
    %1829 = vmatpush2.xpose.msra.mxu0 0.0
    %1830 = vmatprep.subr.mxu0 0.0
    %1831 = vmatpush2.xpose.msra.mxu0 0.0
    %1832 = vmatprep.subr.mxu0 0.0
    %1833 = vmatpush2.xpose.msra.mxu0 0.0
    %1834 = vmatprep.subr.mxu0 0.0
    %1835 = vmatpush2.xpose.msra.mxu0 0.0
    %1836 = vmatprep.subr.mxu0 0.0
    %1837 = vmatpush2.xpose.msra.mxu0 0.0
    %1838 = vmatprep.subr.mxu0 0.0
    %1839 = vmatpush2.xpose.msra.mxu0 0.0
    %1840 = vmatprep.subr.mxu0 0.0
    %1841 = vmatpush2.xpose.msra.mxu0 0.0
    %1842 = vmatprep.subr.mxu0 0.0
    %1843 = vmatpush2.xpose.msra.mxu0 0.0
    %1844 = vmatprep.subr.mxu0 0.0
    %1845 = vmatpush2.xpose.msra.mxu0 0.0
    %1846 = vmatprep.mubr.f32.mxu0 %v1088
    %1847 = vmatmul.mubr.f32.gmra.mxu0 %v1086
    %v1848 = vpop.f32.mrf.mxu0
    %v1849 = vadd.f32 %v1779, %v1848
    %v1850 = vpop.f32.mrf.mxu0
    %1851 = vdwg.mxu0
    %1852 = vmatprep.subr.mxu0 0.0
    %1853 = vmatpush1.xpose.msra.mxu0 0.0
    %1854 = vmatprep.subr.mxu0 0.0
    %1855 = vmatpush1.xpose.msra.mxu0 0.0
    %1856 = vmatprep.subr.mxu0 0.0
    %1857 = vmatpush1.xpose.msra.mxu0 0.0
    %1858 = vmatprep.subr.mxu0 0.0
    %1859 = vmatpush1.xpose.msra.mxu0 0.0
    %1860 = vmatprep.subr.mxu0 0.0
    %1861 = vmatpush1.xpose.msra.mxu0 0.0
    %1862 = vmatprep.subr.mxu0 0.0
    %1863 = vmatpush1.xpose.msra.mxu0 0.0
    %1864 = vmatprep.subr.mxu0 0.0
    %1865 = vmatpush1.xpose.msra.mxu0 0.0
    %1866 = vmatprep.subr.mxu0 0.0
    %1867 = vmatpush1.xpose.msra.mxu0 0.0
    %1868 = vmatprep.subr.mxu0 0.0
    %1869 = vmatpush1.xpose.msra.mxu0 0.0
    %1870 = vmatprep.subr.mxu0 0.0
    %1871 = vmatpush1.xpose.msra.mxu0 0.0
    %1872 = vmatprep.subr.mxu0 0.0
    %1873 = vmatpush1.xpose.msra.mxu0 0.0
    %1874 = vmatprep.subr.mxu0 0.0
    %1875 = vmatpush1.xpose.msra.mxu0 0.0
    %1876 = vmatprep.subr.mxu0 0.0
    %1877 = vmatpush1.xpose.msra.mxu0 0.0
    %1878 = vmatprep.subr.mxu0 0.0
    %1879 = vmatpush1.xpose.msra.mxu0 0.0
    %1880 = vmatprep.subr.mxu0 0.0
    %1881 = vmatpush1.xpose.msra.mxu0 0.0
    %1882 = vmatprep.subr.mxu0 %v1248
    %1883 = vmatpush1.xpose.msra.mxu0 %v1246
    %1884 = vmatprep.subr.mxu0 0.0
    %1885 = vmatpush2.xpose.msra.mxu0 0.0
    %1886 = vmatprep.subr.mxu0 0.0
    %1887 = vmatpush2.xpose.msra.mxu0 0.0
    %1888 = vmatprep.subr.mxu0 0.0
    %1889 = vmatpush2.xpose.msra.mxu0 0.0
    %1890 = vmatprep.subr.mxu0 0.0
    %1891 = vmatpush2.xpose.msra.mxu0 0.0
    %1892 = vmatprep.subr.mxu0 0.0
    %1893 = vmatpush2.xpose.msra.mxu0 0.0
    %1894 = vmatprep.subr.mxu0 0.0
    %1895 = vmatpush2.xpose.msra.mxu0 0.0
    %1896 = vmatprep.subr.mxu0 0.0
    %1897 = vmatpush2.xpose.msra.mxu0 0.0
    %1898 = vmatprep.subr.mxu0 0.0
    %1899 = vmatpush2.xpose.msra.mxu0 0.0
    %1900 = vmatprep.subr.mxu0 0.0
    %1901 = vmatpush2.xpose.msra.mxu0 0.0
    %1902 = vmatprep.subr.mxu0 0.0
    %1903 = vmatpush2.xpose.msra.mxu0 0.0
    %1904 = vmatprep.subr.mxu0 0.0
    %1905 = vmatpush2.xpose.msra.mxu0 0.0
    %1906 = vmatprep.subr.mxu0 0.0
    %1907 = vmatpush2.xpose.msra.mxu0 0.0
    %1908 = vmatprep.subr.mxu0 0.0
    %1909 = vmatpush2.xpose.msra.mxu0 0.0
    %1910 = vmatprep.subr.mxu0 0.0
    %1911 = vmatpush2.xpose.msra.mxu0 0.0
    %1912 = vmatprep.subr.mxu0 0.0
    %1913 = vmatpush2.xpose.msra.mxu0 0.0
    %1914 = vmatprep.subr.mxu0 0.0
    %1915 = vmatpush2.xpose.msra.mxu0 0.0
    %1916 = vmatprep.mubr.f32.mxu0 %v940
    %1917 = vmatmul.mubr.f32.gmra.mxu0 %v938
    %v1918 = vpop.f32.mrf.mxu0
    %v1919 = vadd.f32 0.0, %v1918
    %v1920 = vpop.f32.mrf.mxu0
    %1921 = vdwg.mxu0
    %1922 = vmatprep.subr.mxu0 0.0
    %1923 = vmatpush1.xpose.msra.mxu0 0.0
    %1924 = vmatprep.subr.mxu0 0.0
    %1925 = vmatpush1.xpose.msra.mxu0 0.0
    %1926 = vmatprep.subr.mxu0 0.0
    %1927 = vmatpush1.xpose.msra.mxu0 0.0
    %1928 = vmatprep.subr.mxu0 0.0
    %1929 = vmatpush1.xpose.msra.mxu0 0.0
    %1930 = vmatprep.subr.mxu0 0.0
    %1931 = vmatpush1.xpose.msra.mxu0 0.0
    %1932 = vmatprep.subr.mxu0 0.0
    %1933 = vmatpush1.xpose.msra.mxu0 0.0
    %1934 = vmatprep.subr.mxu0 0.0
    %1935 = vmatpush1.xpose.msra.mxu0 0.0
    %1936 = vmatprep.subr.mxu0 0.0
    %1937 = vmatpush1.xpose.msra.mxu0 0.0
    %1938 = vmatprep.subr.mxu0 0.0
    %1939 = vmatpush1.xpose.msra.mxu0 0.0
    %1940 = vmatprep.subr.mxu0 0.0
    %1941 = vmatpush1.xpose.msra.mxu0 0.0
    %1942 = vmatprep.subr.mxu0 0.0
    %1943 = vmatpush1.xpose.msra.mxu0 0.0
    %1944 = vmatprep.subr.mxu0 0.0
    %1945 = vmatpush1.xpose.msra.mxu0 0.0
    %1946 = vmatprep.subr.mxu0 0.0
    %1947 = vmatpush1.xpose.msra.mxu0 0.0
    %1948 = vmatprep.subr.mxu0 0.0
    %1949 = vmatpush1.xpose.msra.mxu0 0.0
    %1950 = vmatprep.subr.mxu0 0.0
    %1951 = vmatpush1.xpose.msra.mxu0 0.0
    %1952 = vmatprep.subr.mxu0 %v1402
    %1953 = vmatpush1.xpose.msra.mxu0 %v1400
    %1954 = vmatprep.subr.mxu0 0.0
    %1955 = vmatpush2.xpose.msra.mxu0 0.0
    %1956 = vmatprep.subr.mxu0 0.0
    %1957 = vmatpush2.xpose.msra.mxu0 0.0
    %1958 = vmatprep.subr.mxu0 0.0
    %1959 = vmatpush2.xpose.msra.mxu0 0.0
    %1960 = vmatprep.subr.mxu0 0.0
    %1961 = vmatpush2.xpose.msra.mxu0 0.0
    %1962 = vmatprep.subr.mxu0 0.0
    %1963 = vmatpush2.xpose.msra.mxu0 0.0
    %1964 = vmatprep.subr.mxu0 0.0
    %1965 = vmatpush2.xpose.msra.mxu0 0.0
    %1966 = vmatprep.subr.mxu0 0.0
    %1967 = vmatpush2.xpose.msra.mxu0 0.0
    %1968 = vmatprep.subr.mxu0 0.0
    %1969 = vmatpush2.xpose.msra.mxu0 0.0
    %1970 = vmatprep.subr.mxu0 0.0
    %1971 = vmatpush2.xpose.msra.mxu0 0.0
    %1972 = vmatprep.subr.mxu0 0.0
    %1973 = vmatpush2.xpose.msra.mxu0 0.0
    %1974 = vmatprep.subr.mxu0 0.0
    %1975 = vmatpush2.xpose.msra.mxu0 0.0
    %1976 = vmatprep.subr.mxu0 0.0
    %1977 = vmatpush2.xpose.msra.mxu0 0.0
    %1978 = vmatprep.subr.mxu0 0.0
    %1979 = vmatpush2.xpose.msra.mxu0 0.0
    %1980 = vmatprep.subr.mxu0 0.0
    %1981 = vmatpush2.xpose.msra.mxu0 0.0
    %1982 = vmatprep.subr.mxu0 0.0
    %1983 = vmatpush2.xpose.msra.mxu0 0.0
    %1984 = vmatprep.subr.mxu0 0.0
    %1985 = vmatpush2.xpose.msra.mxu0 0.0
    %1986 = vmatprep.mubr.f32.mxu0 %v1094
    %1987 = vmatmul.mubr.f32.gmra.mxu0 %v1092
    %v1988 = vpop.f32.mrf.mxu0
    %v1989 = vadd.f32 %v1919, %v1988
    %v1990 = vpop.f32.mrf.mxu0
    %1991 = vdwg.mxu0
    %vm1992 = vcmask 64512
    %v1993 = vsel %vm1992, %v1849, -inf
    %1994 = vmax.xlane.f32.xlu0 %v1993
    %v1995 = vpop.xlane.xlu0 %1994
    %v1996 = vsel %vm1992, %v1989, -inf
    %1997 = vmax.xlane.f32.xlu0 %v1996
    %v1998 = vpop.xlane.xlu0 %1997
    %v1999 = vsub.f32 %v1849, %v1995
    %v2000 = vsub.f32 %v1989, %v1998
    %v2001 = vmul.f32 %v1999, 1.442695
    %v2002 = vpow.pop %v2001
    %v2003 = vmul.f32 %v2000, 1.442695
    %v2004 = vpow.pop %v2003
    %v2006 = vsel %vm1992, %v2002, 0
    %2008 = vmatprep.subr.mxu0 0.0
    %2009 = vmatpush1.msra.mxu0 0.0
    %2010 = vmatprep.subr.mxu0 0.0
    %2011 = vmatpush1.msra.mxu0 0.0
    %2012 = vmatprep.subr.mxu0 0.0
    %2013 = vmatpush1.msra.mxu0 0.0
    %2014 = vmatprep.subr.mxu0 0.0
    %2015 = vmatpush1.msra.mxu0 0.0
    %2016 = vmatprep.subr.mxu0 0.0
    %2017 = vmatpush1.msra.mxu0 0.0
    %2018 = vmatprep.subr.mxu0 0.0
    %2019 = vmatpush1.msra.mxu0 0.0
    %2020 = vmatprep.subr.mxu0 0.0
    %2021 = vmatpush1.msra.mxu0 0.0
    %2022 = vmatprep.subr.mxu0 0.0
    %2023 = vmatpush1.msra.mxu0 0.0
    %2024 = vmatprep.subr.mxu0 0.0
    %2025 = vmatpush1.msra.mxu0 0.0
    %2026 = vmatprep.subr.mxu0 0.0
    %2027 = vmatpush1.msra.mxu0 0.0
    %2028 = vmatprep.subr.mxu0 0.0
    %2029 = vmatpush1.msra.mxu0 0.0
    %2030 = vmatprep.subr.mxu0 0.0
    %2031 = vmatpush1.msra.mxu0 0.0
    %2032 = vmatprep.subr.mxu0 0.0
    %2033 = vmatpush1.msra.mxu0 0.0
    %2034 = vmatprep.subr.mxu0 0.0
    %2035 = vmatpush1.msra.mxu0 0.0
    %2036 = vmatprep.subr.mxu0 0.0
    %2037 = vmatpush1.msra.mxu0 0.0
    %2038 = vmatprep.subr.mxu0 %v1550
    %2039 = vmatpush1.msra.mxu0 %v1548
    %2040 = vmatprep.subr.mxu0 0.0
    %2041 = vmatpush2.msra.mxu0 0.0
    %2042 = vmatprep.subr.mxu0 0.0
    %2043 = vmatpush2.msra.mxu0 0.0
    %2044 = vmatprep.subr.mxu0 0.0
    %2045 = vmatpush2.msra.mxu0 0.0
    %2046 = vmatprep.subr.mxu0 0.0
    %2047 = vmatpush2.msra.mxu0 0.0
    %2048 = vmatprep.subr.mxu0 0.0
    %2049 = vmatpush2.msra.mxu0 0.0
    %2050 = vmatprep.subr.mxu0 0.0
    %2051 = vmatpush2.msra.mxu0 0.0
    %2052 = vmatprep.subr.mxu0 0.0
    %2053 = vmatpush2.msra.mxu0 0.0
    %2054 = vmatprep.subr.mxu0 0.0
    %2055 = vmatpush2.msra.mxu0 0.0
    %2056 = vmatprep.subr.mxu0 0.0
    %2057 = vmatpush2.msra.mxu0 0.0
    %2058 = vmatprep.subr.mxu0 0.0
    %2059 = vmatpush2.msra.mxu0 0.0
    %2060 = vmatprep.subr.mxu0 0.0
    %2061 = vmatpush2.msra.mxu0 0.0
    %2062 = vmatprep.subr.mxu0 0.0
    %2063 = vmatpush2.msra.mxu0 0.0
    %2064 = vmatprep.subr.mxu0 0.0
    %2065 = vmatpush2.msra.mxu0 0.0
    %2066 = vmatprep.subr.mxu0 0.0
    %2067 = vmatpush2.msra.mxu0 0.0
    %2068 = vmatprep.subr.mxu0 0.0
    %2069 = vmatpush2.msra.mxu0 0.0
    %2070 = vmatprep.subr.mxu0 0.0
    %2071 = vmatpush2.msra.mxu0 0.0
    %2072 = vmatprep.mubr.f32.mxu0 0.0
    %2073 = vmatmul.mubr.f32.gmra.mxu0 %v2006
    %v2074 = vpop.f32.mrf.mxu0
    %v2075 = vadd.f32 0.0, %v2074
    %v2076 = vpop.f32.mrf.mxu0
    %v2077 = vadd.f32 0.0, %v2076
    %2078 = vdwg.mxu0
    %2079 = vmatprep.subr.mxu0 0.0
    %2080 = vmatpush1.msra.mxu0 0.0
    %2081 = vmatprep.subr.mxu0 0.0
    %2082 = vmatpush1.msra.mxu0 0.0
    %2083 = vmatprep.subr.mxu0 0.0
    %2084 = vmatpush1.msra.mxu0 0.0
    %2085 = vmatprep.subr.mxu0 0.0
    %2086 = vmatpush1.msra.mxu0 0.0
    %2087 = vmatprep.subr.mxu0 0.0
    %2088 = vmatpush1.msra.mxu0 0.0
    %2089 = vmatprep.subr.mxu0 0.0
    %2090 = vmatpush1.msra.mxu0 0.0
    %2091 = vmatprep.subr.mxu0 0.0
    %2092 = vmatpush1.msra.mxu0 0.0
    %2093 = vmatprep.subr.mxu0 0.0
    %2094 = vmatpush1.msra.mxu0 0.0
    %2095 = vmatprep.subr.mxu0 0.0
    %2096 = vmatpush1.msra.mxu0 0.0
    %2097 = vmatprep.subr.mxu0 0.0
    %2098 = vmatpush1.msra.mxu0 0.0
    %2099 = vmatprep.subr.mxu0 0.0
    %2100 = vmatpush1.msra.mxu0 0.0
    %2101 = vmatprep.subr.mxu0 0.0
    %2102 = vmatpush1.msra.mxu0 0.0
    %2103 = vmatprep.subr.mxu0 0.0
    %2104 = vmatpush1.msra.mxu0 0.0
    %2105 = vmatprep.subr.mxu0 0.0
    %2106 = vmatpush1.msra.mxu0 0.0
    %2107 = vmatprep.subr.mxu0 0.0
    %2108 = vmatpush1.msra.mxu0 0.0
    %2109 = vmatprep.subr.mxu0 %v1704
    %2110 = vmatpush1.msra.mxu0 %v1702
    %2111 = vmatprep.subr.mxu0 0.0
    %2112 = vmatpush2.msra.mxu0 0.0
    %2113 = vmatprep.subr.mxu0 0.0
    %2114 = vmatpush2.msra.mxu0 0.0
    %2115 = vmatprep.subr.mxu0 0.0
    %2116 = vmatpush2.msra.mxu0 0.0
    %2117 = vmatprep.subr.mxu0 0.0
    %2118 = vmatpush2.msra.mxu0 0.0
    %2119 = vmatprep.subr.mxu0 0.0
    %2120 = vmatpush2.msra.mxu0 0.0
    %2121 = vmatprep.subr.mxu0 0.0
    %2122 = vmatpush2.msra.mxu0 0.0
    %2123 = vmatprep.subr.mxu0 0.0
    %2124 = vmatpush2.msra.mxu0 0.0
    %2125 = vmatprep.subr.mxu0 0.0
    %2126 = vmatpush2.msra.mxu0 0.0
    %2127 = vmatprep.subr.mxu0 0.0
    %2128 = vmatpush2.msra.mxu0 0.0
    %2129 = vmatprep.subr.mxu0 0.0
    %2130 = vmatpush2.msra.mxu0 0.0
    %2131 = vmatprep.subr.mxu0 0.0
    %2132 = vmatpush2.msra.mxu0 0.0
    %2133 = vmatprep.subr.mxu0 0.0
    %2134 = vmatpush2.msra.mxu0 0.0
    %2135 = vmatprep.subr.mxu0 0.0
    %2136 = vmatpush2.msra.mxu0 0.0
    %2137 = vmatprep.subr.mxu0 0.0
    %2138 = vmatpush2.msra.mxu0 0.0
    %2139 = vmatprep.subr.mxu0 0.0
    %2140 = vmatpush2.msra.mxu0 0.0
    %2141 = vmatprep.subr.mxu0 0.0
    %2142 = vmatpush2.msra.mxu0 0.0
    %2143 = vmatprep.mubr.f32.mxu0 0.0
    %2144 = vmatmul.mubr.f32.gmra.mxu0 %v2006
    %v2145 = vpop.f32.mrf.mxu0
    %v2146 = vadd.f32 0.0, %v2145
    %v2147 = vpop.f32.mrf.mxu0
    %v2148 = vadd.f32 0.0, %v2147
    %2149 = vdwg.mxu0
    %v2151 = vsel %vm1992, %v2004, 0
    %2153 = vmatprep.subr.mxu0 0.0
    %2154 = vmatpush1.msra.mxu0 0.0
    %2155 = vmatprep.subr.mxu0 0.0
    %2156 = vmatpush1.msra.mxu0 0.0
    %2157 = vmatprep.subr.mxu0 0.0
    %2158 = vmatpush1.msra.mxu0 0.0
    %2159 = vmatprep.subr.mxu0 0.0
    %2160 = vmatpush1.msra.mxu0 0.0
    %2161 = vmatprep.subr.mxu0 0.0
    %2162 = vmatpush1.msra.mxu0 0.0
    %2163 = vmatprep.subr.mxu0 0.0
    %2164 = vmatpush1.msra.mxu0 0.0
    %2165 = vmatprep.subr.mxu0 0.0
    %2166 = vmatpush1.msra.mxu0 0.0
    %2167 = vmatprep.subr.mxu0 0.0
    %2168 = vmatpush1.msra.mxu0 0.0
    %2169 = vmatprep.subr.mxu0 0.0
    %2170 = vmatpush1.msra.mxu0 0.0
    %2171 = vmatprep.subr.mxu0 0.0
    %2172 = vmatpush1.msra.mxu0 0.0
    %2173 = vmatprep.subr.mxu0 0.0
    %2174 = vmatpush1.msra.mxu0 0.0
    %2175 = vmatprep.subr.mxu0 0.0
    %2176 = vmatpush1.msra.mxu0 0.0
    %2177 = vmatprep.subr.mxu0 0.0
    %2178 = vmatpush1.msra.mxu0 0.0
    %2179 = vmatprep.subr.mxu0 0.0
    %2180 = vmatpush1.msra.mxu0 0.0
    %2181 = vmatprep.subr.mxu0 0.0
    %2182 = vmatpush1.msra.mxu0 0.0
    %2183 = vmatprep.subr.mxu0 %v1556
    %2184 = vmatpush1.msra.mxu0 %v1554
    %2185 = vmatprep.subr.mxu0 0.0
    %2186 = vmatpush2.msra.mxu0 0.0
    %2187 = vmatprep.subr.mxu0 0.0
    %2188 = vmatpush2.msra.mxu0 0.0
    %2189 = vmatprep.subr.mxu0 0.0
    %2190 = vmatpush2.msra.mxu0 0.0
    %2191 = vmatprep.subr.mxu0 0.0
    %2192 = vmatpush2.msra.mxu0 0.0
    %2193 = vmatprep.subr.mxu0 0.0
    %2194 = vmatpush2.msra.mxu0 0.0
    %2195 = vmatprep.subr.mxu0 0.0
    %2196 = vmatpush2.msra.mxu0 0.0
    %2197 = vmatprep.subr.mxu0 0.0
    %2198 = vmatpush2.msra.mxu0 0.0
    %2199 = vmatprep.subr.mxu0 0.0
    %2200 = vmatpush2.msra.mxu0 0.0
    %2201 = vmatprep.subr.mxu0 0.0
    %2202 = vmatpush2.msra.mxu0 0.0
    %2203 = vmatprep.subr.mxu0 0.0
    %2204 = vmatpush2.msra.mxu0 0.0
    %2205 = vmatprep.subr.mxu0 0.0
    %2206 = vmatpush2.msra.mxu0 0.0
    %2207 = vmatprep.subr.mxu0 0.0
    %2208 = vmatpush2.msra.mxu0 0.0
    %2209 = vmatprep.subr.mxu0 0.0
    %2210 = vmatpush2.msra.mxu0 0.0
    %2211 = vmatprep.subr.mxu0 0.0
    %2212 = vmatpush2.msra.mxu0 0.0
    %2213 = vmatprep.subr.mxu0 0.0
    %2214 = vmatpush2.msra.mxu0 0.0
    %2215 = vmatprep.subr.mxu0 0.0
    %2216 = vmatpush2.msra.mxu0 0.0
    %2217 = vmatprep.mubr.f32.mxu0 0.0
    %2218 = vmatmul.mubr.f32.gmra.mxu0 %v2151
    %v2219 = vpop.f32.mrf.mxu0
    %v2220 = vadd.f32 0.0, %v2219
    %v2221 = vpop.f32.mrf.mxu0
    %v2222 = vadd.f32 0.0, %v2221
    %2223 = vdwg.mxu0
    %2224 = vmatprep.subr.mxu0 0.0
    %2225 = vmatpush1.msra.mxu0 0.0
    %2226 = vmatprep.subr.mxu0 0.0
    %2227 = vmatpush1.msra.mxu0 0.0
    %2228 = vmatprep.subr.mxu0 0.0
    %2229 = vmatpush1.msra.mxu0 0.0
    %2230 = vmatprep.subr.mxu0 0.0
    %2231 = vmatpush1.msra.mxu0 0.0
    %2232 = vmatprep.subr.mxu0 0.0
    %2233 = vmatpush1.msra.mxu0 0.0
    %2234 = vmatprep.subr.mxu0 0.0
    %2235 = vmatpush1.msra.mxu0 0.0
    %2236 = vmatprep.subr.mxu0 0.0
    %2237 = vmatpush1.msra.mxu0 0.0
    %2238 = vmatprep.subr.mxu0 0.0
    %2239 = vmatpush1.msra.mxu0 0.0
    %2240 = vmatprep.subr.mxu0 0.0
    %2241 = vmatpush1.msra.mxu0 0.0
    %2242 = vmatprep.subr.mxu0 0.0
    %2243 = vmatpush1.msra.mxu0 0.0
    %2244 = vmatprep.subr.mxu0 0.0
    %2245 = vmatpush1.msra.mxu0 0.0
    %2246 = vmatprep.subr.mxu0 0.0
    %2247 = vmatpush1.msra.mxu0 0.0
    %2248 = vmatprep.subr.mxu0 0.0
    %2249 = vmatpush1.msra.mxu0 0.0
    %2250 = vmatprep.subr.mxu0 0.0
    %2251 = vmatpush1.msra.mxu0 0.0
    %2252 = vmatprep.subr.mxu0 0.0
    %2253 = vmatpush1.msra.mxu0 0.0
    %2254 = vmatprep.subr.mxu0 %v1710
    %2255 = vmatpush1.msra.mxu0 %v1708
    %2256 = vmatprep.subr.mxu0 0.0
    %2257 = vmatpush2.msra.mxu0 0.0
    %2258 = vmatprep.subr.mxu0 0.0
    %2259 = vmatpush2.msra.mxu0 0.0
    %2260 = vmatprep.subr.mxu0 0.0
    %2261 = vmatpush2.msra.mxu0 0.0
    %2262 = vmatprep.subr.mxu0 0.0
    %2263 = vmatpush2.msra.mxu0 0.0
    %2264 = vmatprep.subr.mxu0 0.0
    %2265 = vmatpush2.msra.mxu0 0.0
    %2266 = vmatprep.subr.mxu0 0.0
    %2267 = vmatpush2.msra.mxu0 0.0
    %2268 = vmatprep.subr.mxu0 0.0
    %2269 = vmatpush2.msra.mxu0 0.0
    %2270 = vmatprep.subr.mxu0 0.0
    %2271 = vmatpush2.msra.mxu0 0.0
    %2272 = vmatprep.subr.mxu0 0.0
    %2273 = vmatpush2.msra.mxu0 0.0
    %2274 = vmatprep.subr.mxu0 0.0
    %2275 = vmatpush2.msra.mxu0 0.0
    %2276 = vmatprep.subr.mxu0 0.0
    %2277 = vmatpush2.msra.mxu0 0.0
    %2278 = vmatprep.subr.mxu0 0.0
    %2279 = vmatpush2.msra.mxu0 0.0
    %2280 = vmatprep.subr.mxu0 0.0
    %2281 = vmatpush2.msra.mxu0 0.0
    %2282 = vmatprep.subr.mxu0 0.0
    %2283 = vmatpush2.msra.mxu0 0.0
    %2284 = vmatprep.subr.mxu0 0.0
    %2285 = vmatpush2.msra.mxu0 0.0
    %2286 = vmatprep.subr.mxu0 0.0
    %2287 = vmatpush2.msra.mxu0 0.0
    %2288 = vmatprep.mubr.f32.mxu0 0.0
    %2289 = vmatmul.mubr.f32.gmra.mxu0 %v2151
    %v2290 = vpop.f32.mrf.mxu0
    %v2291 = vadd.f32 0.0, %v2290
    %v2292 = vpop.f32.mrf.mxu0
    %v2293 = vadd.f32 0.0, %v2292
    %2294 = vdwg.mxu0
    %v2295 = vsel %vm1992, %v2002, 0.0
    %2296 = vadd.xlane.f32.xlu0 %v2295
    %v2297 = vpop.xlane.xlu0 %2296
    %v2298 = vsel %vm1992, %v2004, 0.0
    %2299 = vadd.xlane.f32.xlu0 %v2298
    %v2300 = vpop.xlane.xlu0 %2299
    %v2301 = vrcp.pop %v2297
    %v2302 = vmul.f32 1.0, %v2301
    %v2303 = vrcp.pop %v2300
    %v2304 = vmul.f32 1.0, %v2303
    %v2305 = vmul.f32 %v2075, %v2302
    %v2306 = vmul.f32 %v2077, %v2302
    %v2307 = vmul.f32 %v2146, %v2302
    %v2308 = vmul.f32 %v2148, %v2302
    %v2309 = vmul.f32 %v2220, %v2304
    %v2310 = vmul.f32 %v2222, %v2304
    %v2311 = vmul.f32 %v2291, %v2304
    %v2312 = vmul.f32 %v2293, %v2304
    %2313 = vst [vmem:[#allocation2] sm:$0xff] %v2305
    %2314 = vst [vmem:[#allocation2 + $0x8] sm:$0xff] %v2306
    %2315 = vst [vmem:[#allocation2 + $0x10] sm:$0xff] %v2307
    %2316 = vst [vmem:[#allocation2 + $0x18] sm:$0xff] %v2308
    %2317 = vst [vmem:[#allocation2 + $0x20] sm:$0xff] %v2309
    %2318 = vst [vmem:[#allocation2 + $0x28] sm:$0xff] %v2310
    %2319 = vst [vmem:[#allocation2 + $0x30] sm:$0xff] %v2311
    %2320 = vst [vmem:[#allocation2 + $0x38] sm:$0xff] %v2312
    // Predicated region
    $region10: #{attention_model.1} parent=1 // pred_check
      _
    $region11: #{attention_model.1} parent=1 // pred_check_branch
      %2322 = sbr.rel (0) target = $region13
    $region12: #{attention_model.1} parent=1 // pred_region
      %s2324 = ssub.s32 1024, 1024
      %2325 = vsyncadd [#allocation3], %s2324
      %s2326 = sshll.u32 [#allocation2], 4
      %s2327 = int_to_ptr.vmem [resolvable:$true] %s2326
      %2332 = dma.vmem_to_hbm [thread:$0]  %s2327, 1024, %s2, [#allocation3], 512, 512, 32
    $region13: #{attention_model.1} parent=1 // pred_fallthru
      _
    // Predicated region
    $region14: #{attention_model.1} parent=1 // pred_check
      _
    $region15: #{attention_model.1} parent=1 // pred_check_branch
      %2334 = sbr.rel (0) target = $region17
    $region16: #{attention_model.1} parent=1 // pred_region
      %2335 = dma.done [#allocation3], 1024
    $region17: #{attention_model.1} parent=1 // pred_fallthru
      _
    %2336 = vsyncpa [#allocation3], 1

</llo_original>
